<compile_context>
chip_gen: v7x
topology: tpu7x:2x2x1
jax: 0.10.0
libtpu: 0.0.40
codegen_flags: <defaults>
</compile_context>

<pallas_src>
import functools

import jax
import jax.numpy as jnp
from jax.experimental import pallas as pl
from jax.experimental.pallas import tpu as pltpu


LANE = 128      # TPU lane width; every feature dim is padded up to this
TM_MAX = 512    # row tile for the aggregation matmul
TK_MAX = 1024   # contraction tile (A_hat columns) for the aggregation matmul


def _round_up(x, m):
    return (x + m - 1) // m * m


def _tiles_for(n):
    """Pick (n_pad, tm, tk) with n_pad divisible by both tile sizes."""
    n_pad = _round_up(n, LANE)
    tm = min(TM_MAX, n_pad)
    tk = min(TK_MAX, n_pad)
    n_pad = _round_up(n_pad, tm)
    n_pad = _round_up(n_pad, tk)
    return n_pad, tm, tk


def _pad2(x, rows, cols):
    return jnp.pad(x, ((0, rows - x.shape[0]), (0, cols - x.shape[1])))


# ---------------------------------------------------------------------------
# Pallas kernels
# ---------------------------------------------------------------------------
def _xw_kernel(x_ref, w_ref, o_ref):
    # Feature transform X @ W, computed once per layer (hoisted out of the
    # aggregation k-loop).
    o_ref[...] = jnp.dot(
        x_ref[...], w_ref[...], preferred_element_type=jnp.float32
    ).astype(o_ref.dtype)


def _gcn_agg_kernel(a_ref, xw_ref, b_ref, o_ref, acc_ref, *, apply_tanh):
    # acc[i] += A[i, k] @ XW[k]; bias + tanh in the k==last epilogue.
    k = pl.program_id(1)

    @pl.when(k == 0)
    def _():
        acc_ref[...] = jnp.zeros_like(acc_ref)

    acc_ref[...] += jnp.dot(
        a_ref[...].astype(jnp.float32), xw_ref[...],
        preferred_element_type=jnp.float32)

    @pl.when(k == pl.num_programs(1) - 1)
    def _():
        h = acc_ref[...] + b_ref[...]          # bias (1, F) broadcasts over rows
        if apply_tanh:
            h = jnp.tanh(h)
        o_ref[...] = h.astype(o_ref.dtype)


def _gcn_agg_cls_kernel(a_ref, xw_ref, b_ref, wc_ref, bc_ref, o_ref, acc_ref):
    # Third conv layer with the Linear classifier fused into the epilogue:
    #   out = tanh(A @ XW + b3) @ Wc + bc
    k = pl.program_id(1)

    @pl.when(k == 0)
    def _():
        acc_ref[...] = jnp.zeros_like(acc_ref)

    acc_ref[...] += jnp.dot(
        a_ref[...].astype(jnp.float32), xw_ref[...],
        preferred_element_type=jnp.float32)

    @pl.when(k == pl.num_programs(1) - 1)
    def _():
        h = jnp.tanh(acc_ref[...] + b_ref[...])
        out = jnp.dot(h, wc_ref[...], preferred_element_type=jnp.float32)
        o_ref[...] = (out + bc_ref[...]).astype(o_ref.dtype)


# ---------------------------------------------------------------------------
# pallas_call wrappers
# ---------------------------------------------------------------------------
def xw_matmul(x, w, *, tile_rows):
    n_pad, f_in = x.shape
    f_out = w.shape[1]
    return pl.pallas_call(
        _xw_kernel,
        out_shape=jax.ShapeDtypeStruct((n_pad, f_out), jnp.float32),
        grid=(n_pad // tile_rows,),
        in_specs=[
            pl.BlockSpec((tile_rows, f_in), lambda i: (i, 0)),
            pl.BlockSpec((f_in, f_out), lambda i: (0, 0)),
        ],
        out_specs=pl.BlockSpec((tile_rows, f_out), lambda i: (i, 0)),
        compiler_params=pltpu.CompilerParams(dimension_semantics=("parallel",)),
        cost_estimate=pl.CostEstimate(
            flops=2 * n_pad * f_in * f_out,
            transcendentals=0,
            bytes_accessed=4 * (n_pad * f_in + f_in * f_out + n_pad * f_out)),
    )(x, w)


def gcn_aggregate(a_hat, xw, b, *, tm, tk, apply_tanh=True, wc=None, bc=None):
    """out = [tanh](A_hat @ XW + b) [@ Wc + bc], tiled over (rows, contraction)."""
    n_pad = a_hat.shape[0]
    f_mid = xw.shape[1]
    grid = (n_pad // tm, n_pad // tk)

    flops = 2 * n_pad * n_pad * f_mid
    bytes_accessed = 2 * n_pad * n_pad + 4 * n_pad * f_mid  # bf16 A + f32 XW

    if wc is None:
        f_out = f_mid
        kernel = functools.partial(_gcn_agg_kernel, apply_tanh=apply_tanh)
        operands = (a_hat, xw, b)
        extra_specs = []
    else:
        f_out = wc.shape[1]
        kernel = _gcn_agg_cls_kernel
        operands = (a_hat, xw, b, wc, bc)
        extra_specs = [
            pl.BlockSpec(wc.shape, lambda i, k: (0, 0)),
            pl.BlockSpec((1, f_out), lambda i, k: (0, 0)),
        ]
        flops += 2 * n_pad * f_mid * f_out
    bytes_accessed += 4 * n_pad * f_out

    return pl.pallas_call(
        kernel,
        out_shape=jax.ShapeDtypeStruct((n_pad, f_out), jnp.float32),
        grid=grid,
        in_specs=[
            pl.BlockSpec((tm, tk), lambda i, k: (i, k)),     # A_hat tile (bf16)
            pl.BlockSpec((tk, f_mid), lambda i, k: (k, 0)),  # XW tile
            pl.BlockSpec((1, f_mid), lambda i, k: (0, 0)),   # bias
        ] + extra_specs,
        out_specs=pl.BlockSpec((tm, f_out), lambda i, k: (i, 0)),
        scratch_shapes=[pltpu.VMEM((tm, f_mid), jnp.float32)],
        compiler_params=pltpu.CompilerParams(
            dimension_semantics=("parallel", "arbitrary")),
        cost_estimate=pl.CostEstimate(
            flops=flops,
            transcendentals=n_pad * f_mid,
            bytes_accessed=bytes_accessed),
    )(*operands)


# ---------------------------------------------------------------------------
# Plain-JAX glue: dense normalized adjacency from edge_index
# (torch_geometric GCNConv default: add self loops + D^-1/2 A D^-1/2)
# ---------------------------------------------------------------------------
def normalized_adjacency(edge_index, num_nodes):
    src = edge_index[0]
    dst = edge_index[1]
    loop = jnp.arange(num_nodes, dtype=src.dtype)
    src = jnp.concatenate([src, loop])
    dst = jnp.concatenate([dst, loop])
    deg = jnp.zeros((num_nodes,), jnp.float32).at[dst].add(1.0)
    dinv_sqrt = jnp.where(deg > 0, 1.0 / jnp.sqrt(deg), 0.0)
    norm = dinv_sqrt[src] * dinv_sqrt[dst]
    a_hat = jnp.zeros((num_nodes, num_nodes), jnp.float32).at[dst, src].add(norm)
    return a_hat


# ---------------------------------------------------------------------------
# GCN module: parameter init + forward
# ---------------------------------------------------------------------------
def init_params(key, num_features, hidden_channels, num_classes):
    def glorot(k, fan_in, fan_out):
        limit = jnp.sqrt(6.0 / (fan_in + fan_out))
        return jax.random.uniform(k, (fan_in, fan_out), jnp.float32, -limit, limit)

    k1, k2, k3, k4 = jax.random.split(key, 4)
    h2 = hidden_channels // 2
    return {
        "w1": glorot(k1, num_features, hidden_channels),
        "b1": jnp.zeros((1, hidden_channels), jnp.float32),
        "w2": glorot(k2, hidden_channels, hidden_channels),
        "b2": jnp.zeros((1, hidden_channels), jnp.float32),
        "w3": glorot(k3, hidden_channels, h2),
        "b3": jnp.zeros((1, h2), jnp.float32),
        "wc": glorot(k4, h2, num_classes),
        "bc": jnp.zeros((1, num_classes), jnp.float32),
    }


@jax.jit
def gcn_forward(params, x, a_hat):
    n, f_in = x.shape
    num_classes = params["wc"].shape[1]
    n_pad, tm, tk = _tiles_for(n)

    # bf16 A_hat halves the dominant HBM traffic; accumulation stays f32.
    a_p = _pad2(a_hat, n_pad, n_pad).astype(jnp.bfloat16)
    # Lane-dense padding of features / weights / biases (zeros, math-inert).
    x_p = _pad2(x, n_pad, _round_up(f_in, LANE))

    def pw(w):
        return _pad2(w, _round_up(w.shape[0], LANE), _round_up(w.shape[1], LANE))

    def pb(b):
        return _pad2(b, 1, _round_up(b.shape[1], LANE))

    w1, b1 = pw(params["w1"]), pb(params["b1"])
    w2, b2 = pw(params["w2"]), pb(params["b2"])
    w3, b3 = pw(params["w3"]), pb(params["b3"])
    wc, bc = pw(params["wc"]), pb(params["bc"])

    # Layer 1: h = tanh(A_hat @ (X @ W1) + b1)
    xw = xw_matmul(x_p, w1, tile_rows=tk)
    h = gcn_aggregate(a_p, xw, b1, tm=tm, tk=tk, apply_tanh=True)
    # Layer 2
    xw = xw_matmul(h, w2, tile_rows=tk)
    h = gcn_aggregate(a_p, xw, b2, tm=tm, tk=tk, apply_tanh=True)
    # Layer 3 with the Linear classifier fused into the epilogue
    xw = xw_matmul(h, w3, tile_rows=tk)
    out_p = gcn_aggregate(a_p, xw, b3, tm=tm, tk=tk, apply_tanh=True,
                          wc=wc, bc=bc)

    return out_p[:n, :num_classes]


if __name__ == "__main__":
    # Small synthetic graph consistent with the module's forward.
    NUM_NODES = 64
    NUM_FEATURES = 16
    HIDDEN_CHANNELS = 32
    NUM_CLASSES = 8
    NUM_EDGES = 256

    key = jax.random.PRNGKey(0)
    kx, ke, kp = jax.random.split(key, 3)

    x = jax.random.normal(kx, (NUM_NODES, NUM_FEATURES), jnp.float32)
    edge_index = jax.random.randint(ke, (2, NUM_EDGES), 0, NUM_NODES, jnp.int32)

    params = init_params(kp, NUM_FEATURES, HIDDEN_CHANNELS, NUM_CLASSES)
    a_hat = normalized_adjacency(edge_index, NUM_NODES)

    out = gcn_forward(params, x, a_hat)
    jax.block_until_ready(out)

    # Pure-JAX reference: identical math with A_hat quantized to bf16 (exactly
    # as the kernels stream it); everything else in f32.
    a_q = a_hat.astype(jnp.bfloat16).astype(jnp.float32)
    h_ref = jnp.tanh(a_q @ (x @ params["w1"]) + params["b1"])
    h_ref = jnp.tanh(a_q @ (h_ref @ params["w2"]) + params["b2"])
    h_ref = jnp.tanh(a_q @ (h_ref @ params["w3"]) + params["b3"])
    out_ref = h_ref @ params["wc"] + params["bc"]

    assert out.shape == (NUM_NODES, NUM_CLASSES)
    assert jnp.allclose(out, out_ref, atol=1e-4, rtol=1e-4), float(
        jnp.max(jnp.abs(out - out_ref)))

    print("KERNEL_OK")
</pallas_src>

<mosaic_0001>
module attributes {stable_mosaic.version = 11 : i64} {
  func.func @_xw_kernel(%arg0: i32, %arg1: memref<128x128xf32, #tpu.memory_space<vmem>>, %arg2: memref<128x128xf32, #tpu.memory_space<vmem>>, %arg3: memref<128x128xf32, #tpu.memory_space<vmem>>) attributes {dimension_semantics = [#tpu.dimension_semantics<parallel>], iteration_bounds = array<i64: 1>, scalar_prefetch = 0 : i64, scratch_operands = 0 : i64, tpu.core_type = #tpu.core_type<tc>, window_params = [{transform_indices = @transform_0, window_bounds = array<i64: 128, 128>}, {pipeline_mode = #tpu.pipeline_mode<synchronous>, transform_indices = @transform_1, window_bounds = array<i64: 128, 128>}, {transform_indices = @transform_2, window_bounds = array<i64: 128, 128>}]} {
    %c0 = arith.constant 0 : index
    %c0_0 = arith.constant 0 : index
    %0 = vector.load %arg1[%c0, %c0_0] : memref<128x128xf32, #tpu.memory_space<vmem>>, vector<128x128xf32>
    %c0_1 = arith.constant 0 : index
    %c0_2 = arith.constant 0 : index
    %1 = vector.load %arg2[%c0_1, %c0_2] : memref<128x128xf32, #tpu.memory_space<vmem>>, vector<128x128xf32>
    %cst = arith.constant dense<0.000000e+00> : vector<128x128xf32>
    %2 = tpu.matmul %0, %1, %cst {dimension_numbers = #tpu.dot_dimension_numbers<[1], [0], [0], [1], [0, 0, 1, 1], [], []>} : vector<128x128xf32>, vector<128x128xf32>, vector<128x128xf32> -> vector<128x128xf32>
    %c0_3 = arith.constant 0 : index
    %c0_4 = arith.constant 0 : index
    %3 = vector.load %arg3[%c0_3, %c0_4] : memref<128x128xf32, #tpu.memory_space<vmem>>, vector<128x128xf32>
    tpu.vector_store %arg3[%c0_3, %c0_4], %2 {strides = array<i32>} : memref<128x128xf32, #tpu.memory_space<vmem>>, vector<128x128xf32>,
    return
  }
  func.func @transform_0(%arg0: i32) -> (i32, i32) {
    %c0_i32 = arith.constant 0 : i32
    %c0_i32_0 = arith.constant 0 : i32
    return %arg0, %c0_i32 : i32, i32
  }
  func.func @transform_1(%arg0: i32) -> (i32, i32) {
    %c0_i32 = arith.constant 0 : i32
    %c0_i32_0 = arith.constant 0 : i32
    %c0_i32_1 = arith.constant 0 : i32
    return %c0_i32, %c0_i32_0 : i32, i32
  }
  func.func @transform_2(%arg0: i32) -> (i32, i32) {
    %c0_i32 = arith.constant 0 : i32
    %c0_i32_0 = arith.constant 0 : i32
    return %arg0, %c0_i32 : i32, i32
  }
}

module attributes {stable_mosaic.version = 11 : i64} {
  func.func @_gcn_agg_kernel(%arg0: i32, %arg1: i32, %arg2: memref<128x128xbf16, #tpu.memory_space<vmem>>, %arg3: memref<128x128xf32, #tpu.memory_space<vmem>>, %arg4: memref<1x128xf32, #tpu.memory_space<vmem>>, %arg5: memref<128x128xf32, #tpu.memory_space<vmem>>, %arg6: memref<128x128xf32, #tpu.memory_space<vmem>>) attributes {dimension_semantics = [#tpu.dimension_semantics<parallel>, #tpu.dimension_semantics<arbitrary>], iteration_bounds = array<i64: 1, 1>, scalar_prefetch = 0 : i64, scratch_operands = 1 : i64, tpu.core_type = #tpu.core_type<tc>, window_params = [{transform_indices = @transform_0, window_bounds = array<i64: 128, 128>}, {transform_indices = @transform_1, window_bounds = array<i64: 128, 128>}, {pipeline_mode = #tpu.pipeline_mode<synchronous>, transform_indices = @transform_2, window_bounds = array<i64: 1, 128>}, {transform_indices = @transform_3, window_bounds = array<i64: 128, 128>}]} {
    %c0_i32 = arith.constant 0 : i32
    %0 = arith.cmpi eq, %arg1, %c0_i32 : i32
    %1 = arith.extui %0 : i1 to i32
    %c0_i32_0 = arith.constant 0 : i32
    %2 = arith.cmpi ne, %1, %c0_i32_0 : i32
    scf.if %2 {
      %cst_10 = arith.constant 0.000000e+00 : f32
      %13 = vector.broadcast %cst_10 : f32 to vector<128x128xf32>
      %c0_11 = arith.constant 0 : index
      %c0_12 = arith.constant 0 : index
      %14 = vector.load %arg6[%c0_11, %c0_12] : memref<128x128xf32, #tpu.memory_space<vmem>>, vector<128x128xf32>
      tpu.vector_store %arg6[%c0_11, %c0_12], %13 {strides = array<i32>} : memref<128x128xf32, #tpu.memory_space<vmem>>, vector<128x128xf32>,
    } else {
    }
    %c0 = arith.constant 0 : index
    %c0_1 = arith.constant 0 : index
    %3 = vector.load %arg6[%c0, %c0_1] : memref<128x128xf32, #tpu.memory_space<vmem>>, vector<128x128xf32>
    %c0_2 = arith.constant 0 : index
    %c0_3 = arith.constant 0 : index
    %4 = vector.load %arg2[%c0_2, %c0_3] : memref<128x128xbf16, #tpu.memory_space<vmem>>, vector<128x128xbf16>
    %5 = arith.extf %4 : vector<128x128xbf16> to vector<128x128xf32>
    %c0_4 = arith.constant 0 : index
    %c0_5 = arith.constant 0 : index
    %6 = vector.load %arg3[%c0_4, %c0_5] : memref<128x128xf32, #tpu.memory_space<vmem>>, vector<128x128xf32>
    %cst = arith.constant dense<0.000000e+00> : vector<128x128xf32>
    %7 = tpu.matmul %5, %6, %cst {dimension_numbers = #tpu.dot_dimension_numbers<[1], [0], [0], [1], [0, 0, 1, 1], [], []>} : vector<128x128xf32>, vector<128x128xf32>, vector<128x128xf32> -> vector<128x128xf32>
    %8 = arith.addf %3, %7 : vector<128x128xf32>
    %c0_6 = arith.constant 0 : index
    %c0_7 = arith.constant 0 : index
    %9 = vector.load %arg6[%c0_6, %c0_7] : memref<128x128xf32, #tpu.memory_space<vmem>>, vector<128x128xf32>
    tpu.vector_store %arg6[%c0_6, %c0_7], %8 {strides = array<i32>} : memref<128x128xf32, #tpu.memory_space<vmem>>, vector<128x128xf32>,
    %c0_i32_8 = arith.constant 0 : i32
    %10 = arith.cmpi eq, %arg1, %c0_i32_8 : i32
    %11 = arith.extui %10 : i1 to i32
    %c0_i32_9 = arith.constant 0 : i32
    %12 = arith.cmpi ne, %11, %c0_i32_9 : i32
    scf.if %12 {
      %c0_10 = arith.constant 0 : index
      %c0_11 = arith.constant 0 : index
      %13 = vector.load %arg6[%c0_10, %c0_11] : memref<128x128xf32, #tpu.memory_space<vmem>>, vector<128x128xf32>
      %c0_12 = arith.constant 0 : index
      %c0_13 = arith.constant 0 : index
      %14 = vector.load %arg4[%c0_12, %c0_13] : memref<1x128xf32, #tpu.memory_space<vmem>>, vector<1x128xf32>
      %15 = vector.broadcast %14 : vector<1x128xf32> to vector<128x128xf32>
      %16 = arith.addf %13, %15 : vector<128x128xf32>
      %17 = math.tanh %16 : vector<128x128xf32>
      %c0_14 = arith.constant 0 : index
      %c0_15 = arith.constant 0 : index
      %18 = vector.load %arg5[%c0_14, %c0_15] : memref<128x128xf32, #tpu.memory_space<vmem>>, vector<128x128xf32>
      tpu.vector_store %arg5[%c0_14, %c0_15], %17 {strides = array<i32>} : memref<128x128xf32, #tpu.memory_space<vmem>>, vector<128x128xf32>,
    } else {
    }
    return
  }
  func.func @transform_0(%arg0: i32, %arg1: i32) -> (i32, i32) {
    %c0_i32 = arith.constant 0 : i32
    return %arg0, %arg1 : i32, i32
  }
  func.func @transform_1(%arg0: i32, %arg1: i32) -> (i32, i32) {
    %c0_i32 = arith.constant 0 : i32
    %c0_i32_0 = arith.constant 0 : i32
    return %arg1, %c0_i32 : i32, i32
  }
  func.func @transform_2(%arg0: i32, %arg1: i32) -> (i32, i32) {
    %c0_i32 = arith.constant 0 : i32
    %c0_i32_0 = arith.constant 0 : i32
    %c0_i32_1 = arith.constant 0 : i32
    return %c0_i32, %c0_i32_0 : i32, i32
  }
  func.func @transform_3(%arg0: i32, %arg1: i32) -> (i32, i32) {
    %c0_i32 = arith.constant 0 : i32
    %c0_i32_0 = arith.constant 0 : i32
    return %arg0, %c0_i32 : i32, i32
  }
}

module attributes {stable_mosaic.version = 11 : i64} {
  func.func @_gcn_agg_cls_kernel(%arg0: i32, %arg1: i32, %arg2: memref<128x128xbf16, #tpu.memory_space<vmem>>, %arg3: memref<128x128xf32, #tpu.memory_space<vmem>>, %arg4: memref<1x128xf32, #tpu.memory_space<vmem>>, %arg5: memref<128x128xf32, #tpu.memory_space<vmem>>, %arg6: memref<1x128xf32, #tpu.memory_space<vmem>>, %arg7: memref<128x128xf32, #tpu.memory_space<vmem>>, %arg8: memref<128x128xf32, #tpu.memory_space<vmem>>) attributes {dimension_semantics = [#tpu.dimension_semantics<parallel>, #tpu.dimension_semantics<arbitrary>], iteration_bounds = array<i64: 1, 1>, scalar_prefetch = 0 : i64, scratch_operands = 1 : i64, tpu.core_type = #tpu.core_type<tc>, window_params = [{transform_indices = @transform_0, window_bounds = array<i64: 128, 128>}, {transform_indices = @transform_1, window_bounds = array<i64: 128, 128>}, {pipeline_mode = #tpu.pipeline_mode<synchronous>, transform_indices = @transform_2, window_bounds = array<i64: 1, 128>}, {pipeline_mode = #tpu.pipeline_mode<synchronous>, transform_indices = @transform_3, window_bounds = array<i64: 128, 128>}, {pipeline_mode = #tpu.pipeline_mode<synchronous>, transform_indices = @transform_4, window_bounds = array<i64: 1, 128>}, {transform_indices = @transform_5, window_bounds = array<i64: 128, 128>}]} {
    %c0_i32 = arith.constant 0 : i32
    %0 = arith.cmpi eq, %arg1, %c0_i32 : i32
    %1 = arith.extui %0 : i1 to i32
    %c0_i32_0 = arith.constant 0 : i32
    %2 = arith.cmpi ne, %1, %c0_i32_0 : i32
    scf.if %2 {
      %cst_10 = arith.constant 0.000000e+00 : f32
      %13 = vector.broadcast %cst_10 : f32 to vector<128x128xf32>
      %c0_11 = arith.constant 0 : index
      %c0_12 = arith.constant 0 : index
      %14 = vector.load %arg8[%c0_11, %c0_12] : memref<128x128xf32, #tpu.memory_space<vmem>>, vector<128x128xf32>
      tpu.vector_store %arg8[%c0_11, %c0_12], %13 {strides = array<i32>} : memref<128x128xf32, #tpu.memory_space<vmem>>, vector<128x128xf32>,
    } else {
    }
    %c0 = arith.constant 0 : index
    %c0_1 = arith.constant 0 : index
    %3 = vector.load %arg8[%c0, %c0_1] : memref<128x128xf32, #tpu.memory_space<vmem>>, vector<128x128xf32>
    %c0_2 = arith.constant 0 : index
    %c0_3 = arith.constant 0 : index
    %4 = vector.load %arg2[%c0_2, %c0_3] : memref<128x128xbf16, #tpu.memory_space<vmem>>, vector<128x128xbf16>
    %5 = arith.extf %4 : vector<128x128xbf16> to vector<128x128xf32>
    %c0_4 = arith.constant 0 : index
    %c0_5 = arith.constant 0 : index
    %6 = vector.load %arg3[%c0_4, %c0_5] : memref<128x128xf32, #tpu.memory_space<vmem>>, vector<128x128xf32>
    %cst = arith.constant dense<0.000000e+00> : vector<128x128xf32>
    %7 = tpu.matmul %5, %6, %cst {dimension_numbers = #tpu.dot_dimension_numbers<[1], [0], [0], [1], [0, 0, 1, 1], [], []>} : vector<128x128xf32>, vector<128x128xf32>, vector<128x128xf32> -> vector<128x128xf32>
    %8 = arith.addf %3, %7 : vector<128x128xf32>
    %c0_6 = arith.constant 0 : index
    %c0_7 = arith.constant 0 : index
    %9 = vector.load %arg8[%c0_6, %c0_7] : memref<128x128xf32, #tpu.memory_space<vmem>>, vector<128x128xf32>
    tpu.vector_store %arg8[%c0_6, %c0_7], %8 {strides = array<i32>} : memref<128x128xf32, #tpu.memory_space<vmem>>, vector<128x128xf32>,
    %c0_i32_8 = arith.constant 0 : i32
    %10 = arith.cmpi eq, %arg1, %c0_i32_8 : i32
    %11 = arith.extui %10 : i1 to i32
    %c0_i32_9 = arith.constant 0 : i32
    %12 = arith.cmpi ne, %11, %c0_i32_9 : i32
    scf.if %12 {
      %c0_10 = arith.constant 0 : index
      %c0_11 = arith.constant 0 : index
      %13 = vector.load %arg8[%c0_10, %c0_11] : memref<128x128xf32, #tpu.memory_space<vmem>>, vector<128x128xf32>
      %c0_12 = arith.constant 0 : index
      %c0_13 = arith.constant 0 : index
      %14 = vector.load %arg4[%c0_12, %c0_13] : memref<1x128xf32, #tpu.memory_space<vmem>>, vector<1x128xf32>
      %15 = vector.broadcast %14 : vector<1x128xf32> to vector<128x128xf32>
      %16 = arith.addf %13, %15 : vector<128x128xf32>
      %17 = math.tanh %16 : vector<128x128xf32>
      %c0_14 = arith.constant 0 : index
      %c0_15 = arith.constant 0 : index
      %18 = vector.load %arg5[%c0_14, %c0_15] : memref<128x128xf32, #tpu.memory_space<vmem>>, vector<128x128xf32>
      %cst_16 = arith.constant dense<0.000000e+00> : vector<128x128xf32>
      %19 = tpu.matmul %17, %18, %cst_16 {dimension_numbers = #tpu.dot_dimension_numbers<[1], [0], [0], [1], [0, 0, 1, 1], [], []>} : vector<128x128xf32>, vector<128x128xf32>, vector<128x128xf32> -> vector<128x128xf32>
      %c0_17 = arith.constant 0 : index
      %c0_18 = arith.constant 0 : index
      %20 = vector.load %arg6[%c0_17, %c0_18] : memref<1x128xf32, #tpu.memory_space<vmem>>, vector<1x128xf32>
      %21 = vector.broadcast %20 : vector<1x128xf32> to vector<128x128xf32>
      %22 = arith.addf %19, %21 : vector<128x128xf32>
      %c0_19 = arith.constant 0 : index
      %c0_20 = arith.constant 0 : index
      %23 = vector.load %arg7[%c0_19, %c0_20] : memref<128x128xf32, #tpu.memory_space<vmem>>, vector<128x128xf32>
      tpu.vector_store %arg7[%c0_19, %c0_20], %22 {strides = array<i32>} : memref<128x128xf32, #tpu.memory_space<vmem>>, vector<128x128xf32>,
    } else {
    }
    return
  }
  func.func @transform_0(%arg0: i32, %arg1: i32) -> (i32, i32) {
    %c0_i32 = arith.constant 0 : i32
    return %arg0, %arg1 : i32, i32
  }
  func.func @transform_1(%arg0: i32, %arg1: i32) -> (i32, i32) {
    %c0_i32 = arith.constant 0 : i32
    %c0_i32_0 = arith.constant 0 : i32
    return %arg1, %c0_i32 : i32, i32
  }
  func.func @transform_2(%arg0: i32, %arg1: i32) -> (i32, i32) {
    %c0_i32 = arith.constant 0 : i32
    %c0_i32_0 = arith.constant 0 : i32
    %c0_i32_1 = arith.constant 0 : i32
    return %c0_i32, %c0_i32_0 : i32, i32
  }
  func.func @transform_3(%arg0: i32, %arg1: i32) -> (i32, i32) {
    %c0_i32 = arith.constant 0 : i32
    %c0_i32_0 = arith.constant 0 : i32
    %c0_i32_1 = arith.constant 0 : i32
    return %c0_i32, %c0_i32_0 : i32, i32
  }
  func.func @transform_4(%arg0: i32, %arg1: i32) -> (i32, i32) {
    %c0_i32 = arith.constant 0 : i32
    %c0_i32_0 = arith.constant 0 : i32
    %c0_i32_1 = arith.constant 0 : i32
    return %c0_i32, %c0_i32_0 : i32, i32
  }
  func.func @transform_5(%arg0: i32, %arg1: i32) -> (i32, i32) {
    %c0_i32 = arith.constant 0 : i32
    %c0_i32_0 = arith.constant 0 : i32
    return %arg0, %c0_i32 : i32, i32
  }
}

</mosaic_0001>

<llo_original>
// kernel: gcn_forward.6
$region0: #{gcn_forward.6}
  #allocation0 [shape = 'u32[]', space=smem, size = 0x4, offset = 0x4, fixed_abs, tag = 'smem constant byte address 0x4 - core index']
  #allocation1 [shape = 'u32[144,128]{1,0:T(1,128)}', space=vmem, size = 0x12000, scoped, tag = 'internal scratch']
  %s0 = inlined_call_operand.vmem [shape: f32[128,128], index: 0, kind: input, shape index: {}]
  %s1 = inlined_call_operand.vmem [shape: f32[128,128], index: 1, kind: input, shape index: {}]
  %s2 = inlined_call_operand.vmem [shape: f32[128,128], index: 2, kind: output, shape index: {}]
  %s3 = sld [smem:[#allocation0]]
  $region18: #{gcn_forward.6} parent=0
    _
  %s5 = ssub.s32 1, %s3
  %s6 = scalar_select 0, %s5, %s3
  // Predicated region
  $region2: #{gcn_forward.6} parent=0 // pred_check
    _
  $region3: #{gcn_forward.6} parent=0 // pred_check_branch
    %8 = sbr.rel (0) target = $region5
  $region4: #{gcn_forward.6} parent=0 // pred_region
    _
  $region5: #{gcn_forward.6} parent=0 // pred_fallthru
    _
  // Predicated region
  $region6: #{gcn_forward.6} parent=0 // pred_check
    _
  $region7: #{gcn_forward.6} parent=0 // pred_check_branch
    %10 = sbr.rel (0) target = $region9
  $region8: #{gcn_forward.6} parent=0 // pred_region
    _
  $region9: #{gcn_forward.6} parent=0 // pred_fallthru
    _
  %v11 = vld [vmem:[%s0] sm:$0xff]
  %v12 = vld [vmem:[%s0 + $0x8] sm:$0xff]
  %v13 = vld [vmem:[%s0 + $0x10] sm:$0xff]
  %v14 = vld [vmem:[%s0 + $0x18] sm:$0xff]
  %v15 = vld [vmem:[%s0 + $0x20] sm:$0xff]
  %v16 = vld [vmem:[%s0 + $0x28] sm:$0xff]
  %v17 = vld [vmem:[%s0 + $0x30] sm:$0xff]
  %v18 = vld [vmem:[%s0 + $0x38] sm:$0xff]
  %v19 = vld [vmem:[%s0 + $0x40] sm:$0xff]
  %v20 = vld [vmem:[%s0 + $0x48] sm:$0xff]
  %v21 = vld [vmem:[%s0 + $0x50] sm:$0xff]
  %v22 = vld [vmem:[%s0 + $0x58] sm:$0xff]
  %v23 = vld [vmem:[%s0 + $0x60] sm:$0xff]
  %v24 = vld [vmem:[%s0 + $0x68] sm:$0xff]
  %v25 = vld [vmem:[%s0 + $0x70] sm:$0xff]
  %v26 = vld [vmem:[%s0 + $0x78] sm:$0xff]
  %v27 = vld [vmem:[%s1] sm:$0xff]
  %v28 = vld [vmem:[%s1 + $0x8] sm:$0xff]
  %v29 = vld [vmem:[%s1 + $0x10] sm:$0xff]
  %v30 = vld [vmem:[%s1 + $0x18] sm:$0xff]
  %v31 = vld [vmem:[%s1 + $0x20] sm:$0xff]
  %v32 = vld [vmem:[%s1 + $0x28] sm:$0xff]
  %v33 = vld [vmem:[%s1 + $0x30] sm:$0xff]
  %v34 = vld [vmem:[%s1 + $0x38] sm:$0xff]
  %v35 = vld [vmem:[%s1 + $0x40] sm:$0xff]
  %v36 = vld [vmem:[%s1 + $0x48] sm:$0xff]
  %v37 = vld [vmem:[%s1 + $0x50] sm:$0xff]
  %v38 = vld [vmem:[%s1 + $0x58] sm:$0xff]
  %v39 = vld [vmem:[%s1 + $0x60] sm:$0xff]
  %v40 = vld [vmem:[%s1 + $0x68] sm:$0xff]
  %v41 = vld [vmem:[%s1 + $0x70] sm:$0xff]
  %v42 = vld [vmem:[%s1 + $0x78] sm:$0xff]
  %43 = vmatprep.subr.mxu0 0.0
  %44 = vmatpush1.msra.mxu0 %v27
  %45 = vmatprep.subr.mxu0 0.0
  %46 = vmatpush1.msra.mxu0 %v28
  %47 = vmatprep.subr.mxu0 0.0
  %48 = vmatpush1.msra.mxu0 %v29
  %49 = vmatprep.subr.mxu0 0.0
  %50 = vmatpush1.msra.mxu0 %v30
  %51 = vmatprep.subr.mxu0 0.0
  %52 = vmatpush1.msra.mxu0 %v31
  %53 = vmatprep.subr.mxu0 0.0
  %54 = vmatpush1.msra.mxu0 %v32
  %55 = vmatprep.subr.mxu0 0.0
  %56 = vmatpush1.msra.mxu0 %v33
  %57 = vmatprep.subr.mxu0 0.0
  %58 = vmatpush1.msra.mxu0 %v34
  %59 = vmatprep.subr.mxu0 0.0
  %60 = vmatpush1.msra.mxu0 %v35
  %61 = vmatprep.subr.mxu0 0.0
  %62 = vmatpush1.msra.mxu0 %v36
  %63 = vmatprep.subr.mxu0 0.0
  %64 = vmatpush1.msra.mxu0 %v37
  %65 = vmatprep.subr.mxu0 0.0
  %66 = vmatpush1.msra.mxu0 %v38
  %67 = vmatprep.subr.mxu0 0.0
  %68 = vmatpush1.msra.mxu0 %v39
  %69 = vmatprep.subr.mxu0 0.0
  %70 = vmatpush1.msra.mxu0 %v40
  %71 = vmatprep.subr.mxu0 0.0
  %72 = vmatpush1.msra.mxu0 %v41
  %73 = vmatprep.subr.mxu0 0.0
  %74 = vmatpush1.msra.mxu0 %v42
  %75 = vmatprep.subr.mxu0 0.0
  %76 = vmatpush1.msra.mxu0 0.0
  %77 = vmatprep.subr.mxu0 0.0
  %78 = vmatpush1.msra.mxu0 0.0
  %79 = vmatprep.subr.mxu0 0.0
  %80 = vmatpush1.msra.mxu0 0.0
  %81 = vmatprep.subr.mxu0 0.0
  %82 = vmatpush1.msra.mxu0 0.0
  %83 = vmatprep.subr.mxu0 0.0
  %84 = vmatpush1.msra.mxu0 0.0
  %85 = vmatprep.subr.mxu0 0.0
  %86 = vmatpush1.msra.mxu0 0.0
  %87 = vmatprep.subr.mxu0 0.0
  %88 = vmatpush1.msra.mxu0 0.0
  %89 = vmatprep.subr.mxu0 0.0
  %90 = vmatpush1.msra.mxu0 0.0
  %91 = vmatprep.subr.mxu0 0.0
  %92 = vmatpush1.msra.mxu0 0.0
  %93 = vmatprep.subr.mxu0 0.0
  %94 = vmatpush1.msra.mxu0 0.0
  %95 = vmatprep.subr.mxu0 0.0
  %96 = vmatpush1.msra.mxu0 0.0
  %97 = vmatprep.subr.mxu0 0.0
  %98 = vmatpush1.msra.mxu0 0.0
  %99 = vmatprep.subr.mxu0 0.0
  %100 = vmatpush1.msra.mxu0 0.0
  %101 = vmatprep.subr.mxu0 0.0
  %102 = vmatpush1.msra.mxu0 0.0
  %103 = vmatprep.subr.mxu0 0.0
  %104 = vmatpush1.msra.mxu0 0.0
  %105 = vmatprep.subr.mxu0 0.0
  %106 = vmatpush1.msra.mxu0 0.0
  %107 = vmatprep.mubr.f32.mxu0 0.0
  %108 = vmatmul.mubr.f32.gmra.mrb[0].mxu0 %v11
  %v109 = vpop.f32.mrb[0].mxu0
  %v110 = vadd.f32 0.0, %v109
  %v111 = vpop.f32.mrb[0].mxu0
  %112 = vmatprep.mubr.f32.mxu0 0.0
  %113 = vmatmul.mubr.f32.gmra.mrb[0].mxu0 %v12
  %v114 = vpop.f32.mrb[0].mxu0
  %v115 = vadd.f32 0.0, %v114
  %v116 = vpop.f32.mrb[0].mxu0
  %117 = vmatprep.mubr.f32.mxu0 0.0
  %118 = vmatmul.mubr.f32.gmra.mrb[0].mxu0 %v13
  %v119 = vpop.f32.mrb[0].mxu0
  %v120 = vadd.f32 0.0, %v119
  %v121 = vpop.f32.mrb[0].mxu0
  %122 = vmatprep.mubr.f32.mxu0 0.0
  %123 = vmatmul.mubr.f32.gmra.mrb[0].mxu0 %v14
  %v124 = vpop.f32.mrb[0].mxu0
  %v125 = vadd.f32 0.0, %v124
  %v126 = vpop.f32.mrb[0].mxu0
  %127 = vmatprep.mubr.f32.mxu0 0.0
  %128 = vmatmul.mubr.f32.gmra.mrb[0].mxu0 %v15
  %v129 = vpop.f32.mrb[0].mxu0
  %v130 = vadd.f32 0.0, %v129
  %v131 = vpop.f32.mrb[0].mxu0
  %132 = vmatprep.mubr.f32.mxu0 0.0
  %133 = vmatmul.mubr.f32.gmra.mrb[0].mxu0 %v16
  %v134 = vpop.f32.mrb[0].mxu0
  %v135 = vadd.f32 0.0, %v134
  %v136 = vpop.f32.mrb[0].mxu0
  %137 = vmatprep.mubr.f32.mxu0 0.0
  %138 = vmatmul.mubr.f32.gmra.mrb[0].mxu0 %v17
  %v139 = vpop.f32.mrb[0].mxu0
  %v140 = vadd.f32 0.0, %v139
  %v141 = vpop.f32.mrb[0].mxu0
  %142 = vmatprep.mubr.f32.mxu0 0.0
  %143 = vmatmul.mubr.f32.gmra.mrb[0].mxu0 %v18
  %v144 = vpop.f32.mrb[0].mxu0
  %v145 = vadd.f32 0.0, %v144
  %v146 = vpop.f32.mrb[0].mxu0
  %147 = vmatprep.mubr.f32.mxu0 0.0
  %148 = vmatmul.mubr.f32.gmra.mrb[0].mxu0 %v19
  %v149 = vpop.f32.mrb[0].mxu0
  %v150 = vadd.f32 0.0, %v149
  %v151 = vpop.f32.mrb[0].mxu0
  %152 = vmatprep.mubr.f32.mxu0 0.0
  %153 = vmatmul.mubr.f32.gmra.mrb[0].mxu0 %v20
  %v154 = vpop.f32.mrb[0].mxu0
  %v155 = vadd.f32 0.0, %v154
  %v156 = vpop.f32.mrb[0].mxu0
  %157 = vmatprep.mubr.f32.mxu0 0.0
  %158 = vmatmul.mubr.f32.gmra.mrb[0].mxu0 %v21
  %v159 = vpop.f32.mrb[0].mxu0
  %v160 = vadd.f32 0.0, %v159
  %v161 = vpop.f32.mrb[0].mxu0
  %162 = vmatprep.mubr.f32.mxu0 0.0
  %163 = vmatmul.mubr.f32.gmra.mrb[0].mxu0 %v22
  %v164 = vpop.f32.mrb[0].mxu0
  %v165 = vadd.f32 0.0, %v164
  %v166 = vpop.f32.mrb[0].mxu0
  %167 = vmatprep.mubr.f32.mxu0 0.0
  %168 = vmatmul.mubr.f32.gmra.mrb[0].mxu0 %v23
  %v169 = vpop.f32.mrb[0].mxu0
  %v170 = vadd.f32 0.0, %v169
  %v171 = vpop.f32.mrb[0].mxu0
  %172 = vmatprep.mubr.f32.mxu0 0.0
  %173 = vmatmul.mubr.f32.gmra.mrb[0].mxu0 %v24
  %v174 = vpop.f32.mrb[0].mxu0
  %v175 = vadd.f32 0.0, %v174
  %v176 = vpop.f32.mrb[0].mxu0
  %177 = vmatprep.mubr.f32.mxu0 0.0
  %178 = vmatmul.mubr.f32.gmra.mrb[0].mxu0 %v25
  %v179 = vpop.f32.mrb[0].mxu0
  %v180 = vadd.f32 0.0, %v179
  %v181 = vpop.f32.mrb[0].mxu0
  %182 = vmatprep.mubr.f32.mxu0 0.0
  %183 = vmatmul.mubr.f32.gmra.mrb[0].mxu0 %v26
  %v184 = vpop.f32.mrb[0].mxu0
  %v185 = vadd.f32 0.0, %v184
  %v186 = vpop.f32.mrb[0].mxu0
  %187 = vdwg.mxu0
  %188 = vst [vmem:[%s2] sm:$0xff] %v110
  %189 = vst [vmem:[%s2 + $0x8] sm:$0xff] %v115
  %190 = vst [vmem:[%s2 + $0x10] sm:$0xff] %v120
  %191 = vst [vmem:[%s2 + $0x18] sm:$0xff] %v125
  %192 = vst [vmem:[%s2 + $0x20] sm:$0xff] %v130
  %193 = vst [vmem:[%s2 + $0x28] sm:$0xff] %v135
  %194 = vst [vmem:[%s2 + $0x30] sm:$0xff] %v140
  %195 = vst [vmem:[%s2 + $0x38] sm:$0xff] %v145
  %196 = vst [vmem:[%s2 + $0x40] sm:$0xff] %v150
  %197 = vst [vmem:[%s2 + $0x48] sm:$0xff] %v155
  %198 = vst [vmem:[%s2 + $0x50] sm:$0xff] %v160
  %199 = vst [vmem:[%s2 + $0x58] sm:$0xff] %v165
  %200 = vst [vmem:[%s2 + $0x60] sm:$0xff] %v170
  %201 = vst [vmem:[%s2 + $0x68] sm:$0xff] %v175
  %202 = vst [vmem:[%s2 + $0x70] sm:$0xff] %v180
  %203 = vst [vmem:[%s2 + $0x78] sm:$0xff] %v185
  // Predicated region
  $region10: #{gcn_forward.6} parent=0 // pred_check
    _
  $region11: #{gcn_forward.6} parent=0 // pred_check_branch
    %205 = sbr.rel (0) target = $region13
  $region12: #{gcn_forward.6} parent=0 // pred_region
    _
  $region13: #{gcn_forward.6} parent=0 // pred_fallthru
    _
  // Predicated region
  $region14: #{gcn_forward.6} parent=0 // pred_check
    _
  $region15: #{gcn_forward.6} parent=0 // pred_check_branch
    %207 = sbr.rel (0) target = $region17
  $region16: #{gcn_forward.6} parent=0 // pred_region
    _
  $region17: #{gcn_forward.6} parent=0 // pred_fallthru
    _

// kernel: gcn_forward.7
$region0: #{gcn_forward.7}
  #allocation0 [shape = 'u32[]', space=smem, size = 0x4, offset = 0x4, fixed_abs, tag = 'smem constant byte address 0x4 - core index']
  #allocation1 [shape = 'u32[144,128]{1,0:T(1,128)}', space=vmem, size = 0x12000, scoped, tag = 'internal scratch']
  #allocation2 [shape = 'f32[128,128]{1,0:T(8,128)}', space=vmem, size = 0x10000, scoped, tag = 'scratch operand']
  %s0 = inlined_call_operand.vmem [shape: bf16[128,128], index: 0, kind: input, shape index: {}]
  %s1 = inlined_call_operand.vmem [shape: f32[128,128], index: 1, kind: input, shape index: {}]
  %s2 = inlined_call_operand.vmem [shape: f32[1,128], index: 2, kind: input, shape index: {}]
  %s3 = inlined_call_operand.vmem [shape: f32[128,128], index: 3, kind: output, shape index: {}]
  %s4 = sld [smem:[#allocation0]]
  $region30: #{gcn_forward.7} parent=0
    _
  %s6 = ssub.s32 1, %s4
  %s7 = scalar_select 0, %s6, %s4
  // Predicated region
  $region2: #{gcn_forward.7} parent=0 // pred_check
    _
  $region3: #{gcn_forward.7} parent=0 // pred_check_branch
    %9 = sbr.rel (0) target = $region5
  $region4: #{gcn_forward.7} parent=0 // pred_region
    _
  $region5: #{gcn_forward.7} parent=0 // pred_fallthru
    _
  // Predicated region
  $region6: #{gcn_forward.7} parent=0 // pred_check
    _
  $region7: #{gcn_forward.7} parent=0 // pred_check_branch
    %11 = sbr.rel (0) target = $region9
  $region8: #{gcn_forward.7} parent=0 // pred_region
    _
  $region9: #{gcn_forward.7} parent=0 // pred_fallthru
    _
  // Predicated region
  $region10: #{gcn_forward.7} parent=0 // pred_check
    _
  $region11: #{gcn_forward.7} parent=0 // pred_check_branch
    %13 = sbr.rel (0) target = $region13
  $region12: #{gcn_forward.7} parent=0 // pred_region
    _
  $region13: #{gcn_forward.7} parent=0 // pred_fallthru
    _
  %p14 = scmp.eq.s32.totalorder 0, 0
  // Predicated region
  $region14: #{gcn_forward.7} parent=0 // pred_check
    %p15 = pneg %p14
  $region15: #{gcn_forward.7} parent=0 // pred_check_branch
    %17 = sbr.rel (%p15) target = $region17
  $region16: #{gcn_forward.7} parent=0 // pred_region
    %18 = vst [vmem:[#allocation2] sm:$0xff] 0.0
    %19 = vst [vmem:[#allocation2 + $0x8] sm:$0xff] 0.0
    %20 = vst [vmem:[#allocation2 + $0x10] sm:$0xff] 0.0
    %21 = vst [vmem:[#allocation2 + $0x18] sm:$0xff] 0.0
    %22 = vst [vmem:[#allocation2 + $0x20] sm:$0xff] 0.0
    %23 = vst [vmem:[#allocation2 + $0x28] sm:$0xff] 0.0
    %24 = vst [vmem:[#allocation2 + $0x30] sm:$0xff] 0.0
    %25 = vst [vmem:[#allocation2 + $0x38] sm:$0xff] 0.0
    %26 = vst [vmem:[#allocation2 + $0x40] sm:$0xff] 0.0
    %27 = vst [vmem:[#allocation2 + $0x48] sm:$0xff] 0.0
    %28 = vst [vmem:[#allocation2 + $0x50] sm:$0xff] 0.0
    %29 = vst [vmem:[#allocation2 + $0x58] sm:$0xff] 0.0
    %30 = vst [vmem:[#allocation2 + $0x60] sm:$0xff] 0.0
    %31 = vst [vmem:[#allocation2 + $0x68] sm:$0xff] 0.0
    %32 = vst [vmem:[#allocation2 + $0x70] sm:$0xff] 0.0
    %33 = vst [vmem:[#allocation2 + $0x78] sm:$0xff] 0.0
  $region17: #{gcn_forward.7} parent=0 // pred_fallthru
    _
  %v34 = vld [vmem:[#allocation2] sm:$0xff]
  %v35 = vld [vmem:[#allocation2 + $0x8] sm:$0xff]
  %v36 = vld [vmem:[#allocation2 + $0x10] sm:$0xff]
  %v37 = vld [vmem:[#allocation2 + $0x18] sm:$0xff]
  %v38 = vld [vmem:[#allocation2 + $0x20] sm:$0xff]
  %v39 = vld [vmem:[#allocation2 + $0x28] sm:$0xff]
  %v40 = vld [vmem:[#allocation2 + $0x30] sm:$0xff]
  %v41 = vld [vmem:[#allocation2 + $0x38] sm:$0xff]
  %v42 = vld [vmem:[#allocation2 + $0x40] sm:$0xff]
  %v43 = vld [vmem:[#allocation2 + $0x48] sm:$0xff]
  %v44 = vld [vmem:[#allocation2 + $0x50] sm:$0xff]
  %v45 = vld [vmem:[#allocation2 + $0x58] sm:$0xff]
  %v46 = vld [vmem:[#allocation2 + $0x60] sm:$0xff]
  %v47 = vld [vmem:[#allocation2 + $0x68] sm:$0xff]
  %v48 = vld [vmem:[#allocation2 + $0x70] sm:$0xff]
  %v49 = vld [vmem:[#allocation2 + $0x78] sm:$0xff]
  %v50 = vld [vmem:[%s0] sm:$0xf]
  %v51 = vld [vmem:[%s0 + $0x4] sm:$0xf]
  %v52 = vld [vmem:[%s0 + $0x8] sm:$0xf]
  %v53 = vld [vmem:[%s0 + $0xc] sm:$0xf]
  %v54 = vld [vmem:[%s0 + $0x10] sm:$0xf]
  %v55 = vld [vmem:[%s0 + $0x14] sm:$0xf]
  %v56 = vld [vmem:[%s0 + $0x18] sm:$0xf]
  %v57 = vld [vmem:[%s0 + $0x1c] sm:$0xf]
  %v58 = vld [vmem:[%s0 + $0x20] sm:$0xf]
  %v59 = vld [vmem:[%s0 + $0x24] sm:$0xf]
  %v60 = vld [vmem:[%s0 + $0x28] sm:$0xf]
  %v61 = vld [vmem:[%s0 + $0x2c] sm:$0xf]
  %v62 = vld [vmem:[%s0 + $0x30] sm:$0xf]
  %v63 = vld [vmem:[%s0 + $0x34] sm:$0xf]
  %v64 = vld [vmem:[%s0 + $0x38] sm:$0xf]
  %v65 = vld [vmem:[%s0 + $0x3c] sm:$0xf]
  %v66 = vunpack.c.l.bf16 %v50
  %v67 = vunpack.c.l.bf16 %v51
  %v68 = vunpack.c.l.bf16 %v52
  %v69 = vunpack.c.l.bf16 %v53
  %v70 = vunpack.c.l.bf16 %v54
  %v71 = vunpack.c.l.bf16 %v55
  %v72 = vunpack.c.l.bf16 %v56
  %v73 = vunpack.c.l.bf16 %v57
  %v74 = vunpack.c.l.bf16 %v58
  %v75 = vunpack.c.l.bf16 %v59
  %v76 = vunpack.c.l.bf16 %v60
  %v77 = vunpack.c.l.bf16 %v61
  %v78 = vunpack.c.l.bf16 %v62
  %v79 = vunpack.c.l.bf16 %v63
  %v80 = vunpack.c.l.bf16 %v64
  %v81 = vunpack.c.l.bf16 %v65
  %v82 = vld [vmem:[%s1] sm:$0xff]
  %v83 = vld [vmem:[%s1 + $0x8] sm:$0xff]
  %v84 = vld [vmem:[%s1 + $0x10] sm:$0xff]
  %v85 = vld [vmem:[%s1 + $0x18] sm:$0xff]
  %v86 = vld [vmem:[%s1 + $0x20] sm:$0xff]
  %v87 = vld [vmem:[%s1 + $0x28] sm:$0xff]
  %v88 = vld [vmem:[%s1 + $0x30] sm:$0xff]
  %v89 = vld [vmem:[%s1 + $0x38] sm:$0xff]
  %v90 = vld [vmem:[%s1 + $0x40] sm:$0xff]
  %v91 = vld [vmem:[%s1 + $0x48] sm:$0xff]
  %v92 = vld [vmem:[%s1 + $0x50] sm:$0xff]
  %v93 = vld [vmem:[%s1 + $0x58] sm:$0xff]
  %v94 = vld [vmem:[%s1 + $0x60] sm:$0xff]
  %v95 = vld [vmem:[%s1 + $0x68] sm:$0xff]
  %v96 = vld [vmem:[%s1 + $0x70] sm:$0xff]
  %v97 = vld [vmem:[%s1 + $0x78] sm:$0xff]
  %98 = vmatprep.subr.mxu0 0.0
  %99 = vmatpush1.msra.mxu0 %v82
  %100 = vmatprep.subr.mxu0 0.0
  %101 = vmatpush1.msra.mxu0 %v83
  %102 = vmatprep.subr.mxu0 0.0
  %103 = vmatpush1.msra.mxu0 %v84
  %104 = vmatprep.subr.mxu0 0.0
  %105 = vmatpush1.msra.mxu0 %v85
  %106 = vmatprep.subr.mxu0 0.0
  %107 = vmatpush1.msra.mxu0 %v86
  %108 = vmatprep.subr.mxu0 0.0
  %109 = vmatpush1.msra.mxu0 %v87
  %110 = vmatprep.subr.mxu0 0.0
  %111 = vmatpush1.msra.mxu0 %v88
  %112 = vmatprep.subr.mxu0 0.0
  %113 = vmatpush1.msra.mxu0 %v89
  %114 = vmatprep.subr.mxu0 0.0
  %115 = vmatpush1.msra.mxu0 %v90
  %116 = vmatprep.subr.mxu0 0.0
  %117 = vmatpush1.msra.mxu0 %v91
  %118 = vmatprep.subr.mxu0 0.0
  %119 = vmatpush1.msra.mxu0 %v92
  %120 = vmatprep.subr.mxu0 0.0
  %121 = vmatpush1.msra.mxu0 %v93
  %122 = vmatprep.subr.mxu0 0.0
  %123 = vmatpush1.msra.mxu0 %v94
  %124 = vmatprep.subr.mxu0 0.0
  %125 = vmatpush1.msra.mxu0 %v95
  %126 = vmatprep.subr.mxu0 0.0
  %127 = vmatpush1.msra.mxu0 %v96
  %128 = vmatprep.subr.mxu0 0.0
  %129 = vmatpush1.msra.mxu0 %v97
  %130 = vmatprep.subr.mxu0 0.0
  %131 = vmatpush1.msra.mxu0 0.0
  %132 = vmatprep.subr.mxu0 0.0
  %133 = vmatpush1.msra.mxu0 0.0
  %134 = vmatprep.subr.mxu0 0.0
  %135 = vmatpush1.msra.mxu0 0.0
  %136 = vmatprep.subr.mxu0 0.0
  %137 = vmatpush1.msra.mxu0 0.0
  %138 = vmatprep.subr.mxu0 0.0
  %139 = vmatpush1.msra.mxu0 0.0
  %140 = vmatprep.subr.mxu0 0.0
  %141 = vmatpush1.msra.mxu0 0.0
  %142 = vmatprep.subr.mxu0 0.0
  %143 = vmatpush1.msra.mxu0 0.0
  %144 = vmatprep.subr.mxu0 0.0
  %145 = vmatpush1.msra.mxu0 0.0
  %146 = vmatprep.subr.mxu0 0.0
  %147 = vmatpush1.msra.mxu0 0.0
  %148 = vmatprep.subr.mxu0 0.0
  %149 = vmatpush1.msra.mxu0 0.0
  %150 = vmatprep.subr.mxu0 0.0
  %151 = vmatpush1.msra.mxu0 0.0
  %152 = vmatprep.subr.mxu0 0.0
  %153 = vmatpush1.msra.mxu0 0.0
  %154 = vmatprep.subr.mxu0 0.0
  %155 = vmatpush1.msra.mxu0 0.0
  %156 = vmatprep.subr.mxu0 0.0
  %157 = vmatpush1.msra.mxu0 0.0
  %158 = vmatprep.subr.mxu0 0.0
  %159 = vmatpush1.msra.mxu0 0.0
  %160 = vmatprep.subr.mxu0 0.0
  %161 = vmatpush1.msra.mxu0 0.0
  %162 = vmatprep.mubr.f32.mxu0 0.0
  %163 = vmatmul.mubr.f32.gmra.mrb[0].mxu0 %v66
  %v164 = vpop.f32.mrb[0].mxu0
  %v165 = vadd.f32 0.0, %v164
  %v166 = vpop.f32.mrb[0].mxu0
  %167 = vmatprep.mubr.f32.mxu0 0.0
  %168 = vmatmul.mubr.f32.gmra.mrb[0].mxu0 %v67
  %v169 = vpop.f32.mrb[0].mxu0
  %v170 = vadd.f32 0.0, %v169
  %v171 = vpop.f32.mrb[0].mxu0
  %172 = vmatprep.mubr.f32.mxu0 0.0
  %173 = vmatmul.mubr.f32.gmra.mrb[0].mxu0 %v68
  %v174 = vpop.f32.mrb[0].mxu0
  %v175 = vadd.f32 0.0, %v174
  %v176 = vpop.f32.mrb[0].mxu0
  %177 = vmatprep.mubr.f32.mxu0 0.0
  %178 = vmatmul.mubr.f32.gmra.mrb[0].mxu0 %v69
  %v179 = vpop.f32.mrb[0].mxu0
  %v180 = vadd.f32 0.0, %v179
  %v181 = vpop.f32.mrb[0].mxu0
  %182 = vmatprep.mubr.f32.mxu0 0.0
  %183 = vmatmul.mubr.f32.gmra.mrb[0].mxu0 %v70
  %v184 = vpop.f32.mrb[0].mxu0
  %v185 = vadd.f32 0.0, %v184
  %v186 = vpop.f32.mrb[0].mxu0
  %187 = vmatprep.mubr.f32.mxu0 0.0
  %188 = vmatmul.mubr.f32.gmra.mrb[0].mxu0 %v71
  %v189 = vpop.f32.mrb[0].mxu0
  %v190 = vadd.f32 0.0, %v189
  %v191 = vpop.f32.mrb[0].mxu0
  %192 = vmatprep.mubr.f32.mxu0 0.0
  %193 = vmatmul.mubr.f32.gmra.mrb[0].mxu0 %v72
  %v194 = vpop.f32.mrb[0].mxu0
  %v195 = vadd.f32 0.0, %v194
  %v196 = vpop.f32.mrb[0].mxu0
  %197 = vmatprep.mubr.f32.mxu0 0.0
  %198 = vmatmul.mubr.f32.gmra.mrb[0].mxu0 %v73
  %v199 = vpop.f32.mrb[0].mxu0
  %v200 = vadd.f32 0.0, %v199
  %v201 = vpop.f32.mrb[0].mxu0
  %202 = vmatprep.mubr.f32.mxu0 0.0
  %203 = vmatmul.mubr.f32.gmra.mrb[0].mxu0 %v74
  %v204 = vpop.f32.mrb[0].mxu0
  %v205 = vadd.f32 0.0, %v204
  %v206 = vpop.f32.mrb[0].mxu0
  %207 = vmatprep.mubr.f32.mxu0 0.0
  %208 = vmatmul.mubr.f32.gmra.mrb[0].mxu0 %v75
  %v209 = vpop.f32.mrb[0].mxu0
  %v210 = vadd.f32 0.0, %v209
  %v211 = vpop.f32.mrb[0].mxu0
  %212 = vmatprep.mubr.f32.mxu0 0.0
  %213 = vmatmul.mubr.f32.gmra.mrb[0].mxu0 %v76
  %v214 = vpop.f32.mrb[0].mxu0
  %v215 = vadd.f32 0.0, %v214
  %v216 = vpop.f32.mrb[0].mxu0
  %217 = vmatprep.mubr.f32.mxu0 0.0
  %218 = vmatmul.mubr.f32.gmra.mrb[0].mxu0 %v77
  %v219 = vpop.f32.mrb[0].mxu0
  %v220 = vadd.f32 0.0, %v219
  %v221 = vpop.f32.mrb[0].mxu0
  %222 = vmatprep.mubr.f32.mxu0 0.0
  %223 = vmatmul.mubr.f32.gmra.mrb[0].mxu0 %v78
  %v224 = vpop.f32.mrb[0].mxu0
  %v225 = vadd.f32 0.0, %v224
  %v226 = vpop.f32.mrb[0].mxu0
  %227 = vmatprep.mubr.f32.mxu0 0.0
  %228 = vmatmul.mubr.f32.gmra.mrb[0].mxu0 %v79
  %v229 = vpop.f32.mrb[0].mxu0
  %v230 = vadd.f32 0.0, %v229
  %v231 = vpop.f32.mrb[0].mxu0
  %232 = vmatprep.mubr.f32.mxu0 0.0
  %233 = vmatmul.mubr.f32.gmra.mrb[0].mxu0 %v80
  %v234 = vpop.f32.mrb[0].mxu0
  %v235 = vadd.f32 0.0, %v234
  %v236 = vpop.f32.mrb[0].mxu0
  %237 = vmatprep.mubr.f32.mxu0 0.0
  %238 = vmatmul.mubr.f32.gmra.mrb[0].mxu0 %v81
  %v239 = vpop.f32.mrb[0].mxu0
  %v240 = vadd.f32 0.0, %v239
  %v241 = vpop.f32.mrb[0].mxu0
  %242 = vdwg.mxu0
  %v243 = vadd.f32 %v34, %v165
  %v244 = vadd.f32 %v35, %v170
  %v245 = vadd.f32 %v36, %v175
  %v246 = vadd.f32 %v37, %v180
  %v247 = vadd.f32 %v38, %v185
  %v248 = vadd.f32 %v39, %v190
  %v249 = vadd.f32 %v40, %v195
  %v250 = vadd.f32 %v41, %v200
  %v251 = vadd.f32 %v42, %v205
  %v252 = vadd.f32 %v43, %v210
  %v253 = vadd.f32 %v44, %v215
  %v254 = vadd.f32 %v45, %v220
  %v255 = vadd.f32 %v46, %v225
  %v256 = vadd.f32 %v47, %v230
  %v257 = vadd.f32 %v48, %v235
  %v258 = vadd.f32 %v49, %v240
  %259 = vst [vmem:[#allocation2] sm:$0xff] %v243
  %260 = vst [vmem:[#allocation2 + $0x8] sm:$0xff] %v244
  %261 = vst [vmem:[#allocation2 + $0x10] sm:$0xff] %v245
  %262 = vst [vmem:[#allocation2 + $0x18] sm:$0xff] %v246
  %263 = vst [vmem:[#allocation2 + $0x20] sm:$0xff] %v247
  %264 = vst [vmem:[#allocation2 + $0x28] sm:$0xff] %v248
  %265 = vst [vmem:[#allocation2 + $0x30] sm:$0xff] %v249
  %266 = vst [vmem:[#allocation2 + $0x38] sm:$0xff] %v250
  %267 = vst [vmem:[#allocation2 + $0x40] sm:$0xff] %v251
  %268 = vst [vmem:[#allocation2 + $0x48] sm:$0xff] %v252
  %269 = vst [vmem:[#allocation2 + $0x50] sm:$0xff] %v253
  %270 = vst [vmem:[#allocation2 + $0x58] sm:$0xff] %v254
  %271 = vst [vmem:[#allocation2 + $0x60] sm:$0xff] %v255
  %272 = vst [vmem:[#allocation2 + $0x68] sm:$0xff] %v256
  %273 = vst [vmem:[#allocation2 + $0x70] sm:$0xff] %v257
  %274 = vst [vmem:[#allocation2 + $0x78] sm:$0xff] %v258
  // Predicated region
  $region18: #{gcn_forward.7} parent=0 // pred_check
    %p275 = pneg %p14
  $region19: #{gcn_forward.7} parent=0 // pred_check_branch
    %277 = sbr.rel (%p275) target = $region21
  $region20: #{gcn_forward.7} parent=0 // pred_region
    %v278 = vld [vmem:[#allocation2] sm:$0xff]
    %v279 = vld [vmem:[#allocation2 + $0x8] sm:$0xff]
    %v280 = vld [vmem:[#allocation2 + $0x10] sm:$0xff]
    %v281 = vld [vmem:[#allocation2 + $0x18] sm:$0xff]
    %v282 = vld [vmem:[#allocation2 + $0x20] sm:$0xff]
    %v283 = vld [vmem:[#allocation2 + $0x28] sm:$0xff]
    %v284 = vld [vmem:[#allocation2 + $0x30] sm:$0xff]
    %v285 = vld [vmem:[#allocation2 + $0x38] sm:$0xff]
    %v286 = vld [vmem:[#allocation2 + $0x40] sm:$0xff]
    %v287 = vld [vmem:[#allocation2 + $0x48] sm:$0xff]
    %v288 = vld [vmem:[#allocation2 + $0x50] sm:$0xff]
    %v289 = vld [vmem:[#allocation2 + $0x58] sm:$0xff]
    %v290 = vld [vmem:[#allocation2 + $0x60] sm:$0xff]
    %v291 = vld [vmem:[#allocation2 + $0x68] sm:$0xff]
    %v292 = vld [vmem:[#allocation2 + $0x70] sm:$0xff]
    %v293 = vld [vmem:[#allocation2 + $0x78] sm:$0xff]
    %v294 = vld [vmem:[%s2] sm:$0x1]
    %v296 = vlaneseq
    %v297 = vshrl.u32 %v296, 7
    %v298 = vsub.s32 0, %v297
    %v299 = vrot.slane %v294, %v298
    %v301 = vadd.f32 %v278, %v299
    %v302 = vadd.f32 %v279, %v299
    %v303 = vadd.f32 %v280, %v299
    %v304 = vadd.f32 %v281, %v299
    %v305 = vadd.f32 %v282, %v299
    %v306 = vadd.f32 %v283, %v299
    %v307 = vadd.f32 %v284, %v299
    %v308 = vadd.f32 %v285, %v299
    %v309 = vadd.f32 %v286, %v299
    %v310 = vadd.f32 %v287, %v299
    %v311 = vadd.f32 %v288, %v299
    %v312 = vadd.f32 %v289, %v299
    %v313 = vadd.f32 %v290, %v299
    %v314 = vadd.f32 %v291, %v299
    %v315 = vadd.f32 %v292, %v299
    %v316 = vadd.f32 %v293, %v299
    %v317 = vtanh.pop %v301
    %v318 = vtanh.pop %v302
    %v319 = vtanh.pop %v303
    %v320 = vtanh.pop %v304
    %v321 = vtanh.pop %v305
    %v322 = vtanh.pop %v306
    %v323 = vtanh.pop %v307
    %v324 = vtanh.pop %v308
    %v325 = vtanh.pop %v309
    %v326 = vtanh.pop %v310
    %v327 = vtanh.pop %v311
    %v328 = vtanh.pop %v312
    %v329 = vtanh.pop %v313
    %v330 = vtanh.pop %v314
    %v331 = vtanh.pop %v315
    %v332 = vtanh.pop %v316
    %333 = vst [vmem:[%s3] sm:$0xff] %v317
    %334 = vst [vmem:[%s3 + $0x8] sm:$0xff] %v318
    %335 = vst [vmem:[%s3 + $0x10] sm:$0xff] %v319
    %336 = vst [vmem:[%s3 + $0x18] sm:$0xff] %v320
    %337 = vst [vmem:[%s3 + $0x20] sm:$0xff] %v321
    %338 = vst [vmem:[%s3 + $0x28] sm:$0xff] %v322
    %339 = vst [vmem:[%s3 + $0x30] sm:$0xff] %v323
    %340 = vst [vmem:[%s3 + $0x38] sm:$0xff] %v324
    %341 = vst [vmem:[%s3 + $0x40] sm:$0xff] %v325
    %342 = vst [vmem:[%s3 + $0x48] sm:$0xff] %v326
    %343 = vst [vmem:[%s3 + $0x50] sm:$0xff] %v327
    %344 = vst [vmem:[%s3 + $0x58] sm:$0xff] %v328
    %345 = vst [vmem:[%s3 + $0x60] sm:$0xff] %v329
    %346 = vst [vmem:[%s3 + $0x68] sm:$0xff] %v330
    %347 = vst [vmem:[%s3 + $0x70] sm:$0xff] %v331
    %348 = vst [vmem:[%s3 + $0x78] sm:$0xff] %v332
  $region21: #{gcn_forward.7} parent=0 // pred_fallthru
    _
  // Predicated region
  $region22: #{gcn_forward.7} parent=0 // pred_check
    _
  $region23: #{gcn_forward.7} parent=0 // pred_check_branch
    %350 = sbr.rel (0) target = $region25
  $region24: #{gcn_forward.7} parent=0 // pred_region
    _
  $region25: #{gcn_forward.7} parent=0 // pred_fallthru
    _
  // Predicated region
  $region26: #{gcn_forward.7} parent=0 // pred_check
    _
  $region27: #{gcn_forward.7} parent=0 // pred_check_branch
    %352 = sbr.rel (0) target = $region29
  $region28: #{gcn_forward.7} parent=0 // pred_region
    _
  $region29: #{gcn_forward.7} parent=0 // pred_fallthru
    _

// kernel: gcn_forward.11
$region0: #{gcn_forward.11}
  #allocation0 [shape = 'u32[]', space=smem, size = 0x4, offset = 0x4, fixed_abs, tag = 'smem constant byte address 0x4 - core index']
  #allocation1 [shape = 'u32[144,128]{1,0:T(1,128)}', space=vmem, size = 0x12000, scoped, tag = 'internal scratch']
  #allocation2 [shape = 'f32[128,128]{1,0:T(8,128)}', space=vmem, size = 0x10000, scoped, tag = 'scratch operand']
  %s0 = inlined_call_operand.vmem [shape: bf16[128,128], index: 0, kind: input, shape index: {}]
  %s1 = inlined_call_operand.vmem [shape: f32[128,128], index: 1, kind: input, shape index: {}]
  %s2 = inlined_call_operand.vmem [shape: f32[1,128], index: 2, kind: input, shape index: {}]
  %s3 = inlined_call_operand.vmem [shape: f32[128,128], index: 3, kind: input, shape index: {}]
  %s4 = inlined_call_operand.vmem [shape: f32[1,128], index: 4, kind: input, shape index: {}]
  %s5 = inlined_call_operand.vmem [shape: f32[128,128], index: 5, kind: output, shape index: {}]
  %s6 = sld [smem:[#allocation0]]
  $region38: #{gcn_forward.11} parent=0
    _
  %s8 = ssub.s32 1, %s6
  %s9 = scalar_select 0, %s8, %s6
  // Predicated region
  $region2: #{gcn_forward.11} parent=0 // pred_check
    _
  $region3: #{gcn_forward.11} parent=0 // pred_check_branch
    %11 = sbr.rel (0) target = $region5
  $region4: #{gcn_forward.11} parent=0 // pred_region
    _
  $region5: #{gcn_forward.11} parent=0 // pred_fallthru
    _
  // Predicated region
  $region6: #{gcn_forward.11} parent=0 // pred_check
    _
  $region7: #{gcn_forward.11} parent=0 // pred_check_branch
    %13 = sbr.rel (0) target = $region9
  $region8: #{gcn_forward.11} parent=0 // pred_region
    _
  $region9: #{gcn_forward.11} parent=0 // pred_fallthru
    _
  // Predicated region
  $region10: #{gcn_forward.11} parent=0 // pred_check
    _
  $region11: #{gcn_forward.11} parent=0 // pred_check_branch
    %15 = sbr.rel (0) target = $region13
  $region12: #{gcn_forward.11} parent=0 // pred_region
    _
  $region13: #{gcn_forward.11} parent=0 // pred_fallthru
    _
  // Predicated region
  $region14: #{gcn_forward.11} parent=0 // pred_check
    _
  $region15: #{gcn_forward.11} parent=0 // pred_check_branch
    %17 = sbr.rel (0) target = $region17
  $region16: #{gcn_forward.11} parent=0 // pred_region
    _
  $region17: #{gcn_forward.11} parent=0 // pred_fallthru
    _
  // Predicated region
  $region18: #{gcn_forward.11} parent=0 // pred_check
    _
  $region19: #{gcn_forward.11} parent=0 // pred_check_branch
    %19 = sbr.rel (0) target = $region21
  $region20: #{gcn_forward.11} parent=0 // pred_region
    _
  $region21: #{gcn_forward.11} parent=0 // pred_fallthru
    _
  %p20 = scmp.eq.s32.totalorder 0, 0
  // Predicated region
  $region22: #{gcn_forward.11} parent=0 // pred_check
    %p21 = pneg %p20
  $region23: #{gcn_forward.11} parent=0 // pred_check_branch
    %23 = sbr.rel (%p21) target = $region25
  $region24: #{gcn_forward.11} parent=0 // pred_region
    %24 = vst [vmem:[#allocation2] sm:$0xff] 0.0
    %25 = vst [vmem:[#allocation2 + $0x8] sm:$0xff] 0.0
    %26 = vst [vmem:[#allocation2 + $0x10] sm:$0xff] 0.0
    %27 = vst [vmem:[#allocation2 + $0x18] sm:$0xff] 0.0
    %28 = vst [vmem:[#allocation2 + $0x20] sm:$0xff] 0.0
    %29 = vst [vmem:[#allocation2 + $0x28] sm:$0xff] 0.0
    %30 = vst [vmem:[#allocation2 + $0x30] sm:$0xff] 0.0
    %31 = vst [vmem:[#allocation2 + $0x38] sm:$0xff] 0.0
    %32 = vst [vmem:[#allocation2 + $0x40] sm:$0xff] 0.0
    %33 = vst [vmem:[#allocation2 + $0x48] sm:$0xff] 0.0
    %34 = vst [vmem:[#allocation2 + $0x50] sm:$0xff] 0.0
    %35 = vst [vmem:[#allocation2 + $0x58] sm:$0xff] 0.0
    %36 = vst [vmem:[#allocation2 + $0x60] sm:$0xff] 0.0
    %37 = vst [vmem:[#allocation2 + $0x68] sm:$0xff] 0.0
    %38 = vst [vmem:[#allocation2 + $0x70] sm:$0xff] 0.0
    %39 = vst [vmem:[#allocation2 + $0x78] sm:$0xff] 0.0
  $region25: #{gcn_forward.11} parent=0 // pred_fallthru
    _
  %v40 = vld [vmem:[#allocation2] sm:$0xff]
  %v41 = vld [vmem:[#allocation2 + $0x8] sm:$0xff]
  %v42 = vld [vmem:[#allocation2 + $0x10] sm:$0xff]
  %v43 = vld [vmem:[#allocation2 + $0x18] sm:$0xff]
  %v44 = vld [vmem:[#allocation2 + $0x20] sm:$0xff]
  %v45 = vld [vmem:[#allocation2 + $0x28] sm:$0xff]
  %v46 = vld [vmem:[#allocation2 + $0x30] sm:$0xff]
  %v47 = vld [vmem:[#allocation2 + $0x38] sm:$0xff]
  %v48 = vld [vmem:[#allocation2 + $0x40] sm:$0xff]
  %v49 = vld [vmem:[#allocation2 + $0x48] sm:$0xff]
  %v50 = vld [vmem:[#allocation2 + $0x50] sm:$0xff]
  %v51 = vld [vmem:[#allocation2 + $0x58] sm:$0xff]
  %v52 = vld [vmem:[#allocation2 + $0x60] sm:$0xff]
  %v53 = vld [vmem:[#allocation2 + $0x68] sm:$0xff]
  %v54 = vld [vmem:[#allocation2 + $0x70] sm:$0xff]
  %v55 = vld [vmem:[#allocation2 + $0x78] sm:$0xff]
  %v56 = vld [vmem:[%s0] sm:$0xf]
  %v57 = vld [vmem:[%s0 + $0x4] sm:$0xf]
  %v58 = vld [vmem:[%s0 + $0x8] sm:$0xf]
  %v59 = vld [vmem:[%s0 + $0xc] sm:$0xf]
  %v60 = vld [vmem:[%s0 + $0x10] sm:$0xf]
  %v61 = vld [vmem:[%s0 + $0x14] sm:$0xf]
  %v62 = vld [vmem:[%s0 + $0x18] sm:$0xf]
  %v63 = vld [vmem:[%s0 + $0x1c] sm:$0xf]
  %v64 = vld [vmem:[%s0 + $0x20] sm:$0xf]
  %v65 = vld [vmem:[%s0 + $0x24] sm:$0xf]
  %v66 = vld [vmem:[%s0 + $0x28] sm:$0xf]
  %v67 = vld [vmem:[%s0 + $0x2c] sm:$0xf]
  %v68 = vld [vmem:[%s0 + $0x30] sm:$0xf]
  %v69 = vld [vmem:[%s0 + $0x34] sm:$0xf]
  %v70 = vld [vmem:[%s0 + $0x38] sm:$0xf]
  %v71 = vld [vmem:[%s0 + $0x3c] sm:$0xf]
  %v72 = vunpack.c.l.bf16 %v56
  %v73 = vunpack.c.l.bf16 %v57
  %v74 = vunpack.c.l.bf16 %v58
  %v75 = vunpack.c.l.bf16 %v59
  %v76 = vunpack.c.l.bf16 %v60
  %v77 = vunpack.c.l.bf16 %v61
  %v78 = vunpack.c.l.bf16 %v62
  %v79 = vunpack.c.l.bf16 %v63
  %v80 = vunpack.c.l.bf16 %v64
  %v81 = vunpack.c.l.bf16 %v65
  %v82 = vunpack.c.l.bf16 %v66
  %v83 = vunpack.c.l.bf16 %v67
  %v84 = vunpack.c.l.bf16 %v68
  %v85 = vunpack.c.l.bf16 %v69
  %v86 = vunpack.c.l.bf16 %v70
  %v87 = vunpack.c.l.bf16 %v71
  %v88 = vld [vmem:[%s1] sm:$0xff]
  %v89 = vld [vmem:[%s1 + $0x8] sm:$0xff]
  %v90 = vld [vmem:[%s1 + $0x10] sm:$0xff]
  %v91 = vld [vmem:[%s1 + $0x18] sm:$0xff]
  %v92 = vld [vmem:[%s1 + $0x20] sm:$0xff]
  %v93 = vld [vmem:[%s1 + $0x28] sm:$0xff]
  %v94 = vld [vmem:[%s1 + $0x30] sm:$0xff]
  %v95 = vld [vmem:[%s1 + $0x38] sm:$0xff]
  %v96 = vld [vmem:[%s1 + $0x40] sm:$0xff]
  %v97 = vld [vmem:[%s1 + $0x48] sm:$0xff]
  %v98 = vld [vmem:[%s1 + $0x50] sm:$0xff]
  %v99 = vld [vmem:[%s1 + $0x58] sm:$0xff]
  %v100 = vld [vmem:[%s1 + $0x60] sm:$0xff]
  %v101 = vld [vmem:[%s1 + $0x68] sm:$0xff]
  %v102 = vld [vmem:[%s1 + $0x70] sm:$0xff]
  %v103 = vld [vmem:[%s1 + $0x78] sm:$0xff]
  %104 = vmatprep.subr.mxu0 0.0
  %105 = vmatpush1.msra.mxu0 %v88
  %106 = vmatprep.subr.mxu0 0.0
  %107 = vmatpush1.msra.mxu0 %v89
  %108 = vmatprep.subr.mxu0 0.0
  %109 = vmatpush1.msra.mxu0 %v90
  %110 = vmatprep.subr.mxu0 0.0
  %111 = vmatpush1.msra.mxu0 %v91
  %112 = vmatprep.subr.mxu0 0.0
  %113 = vmatpush1.msra.mxu0 %v92
  %114 = vmatprep.subr.mxu0 0.0
  %115 = vmatpush1.msra.mxu0 %v93
  %116 = vmatprep.subr.mxu0 0.0
  %117 = vmatpush1.msra.mxu0 %v94
  %118 = vmatprep.subr.mxu0 0.0
  %119 = vmatpush1.msra.mxu0 %v95
  %120 = vmatprep.subr.mxu0 0.0
  %121 = vmatpush1.msra.mxu0 %v96
  %122 = vmatprep.subr.mxu0 0.0
  %123 = vmatpush1.msra.mxu0 %v97
  %124 = vmatprep.subr.mxu0 0.0
  %125 = vmatpush1.msra.mxu0 %v98
  %126 = vmatprep.subr.mxu0 0.0
  %127 = vmatpush1.msra.mxu0 %v99
  %128 = vmatprep.subr.mxu0 0.0
  %129 = vmatpush1.msra.mxu0 %v100
  %130 = vmatprep.subr.mxu0 0.0
  %131 = vmatpush1.msra.mxu0 %v101
  %132 = vmatprep.subr.mxu0 0.0
  %133 = vmatpush1.msra.mxu0 %v102
  %134 = vmatprep.subr.mxu0 0.0
  %135 = vmatpush1.msra.mxu0 %v103
  %136 = vmatprep.subr.mxu0 0.0
  %137 = vmatpush1.msra.mxu0 0.0
  %138 = vmatprep.subr.mxu0 0.0
  %139 = vmatpush1.msra.mxu0 0.0
  %140 = vmatprep.subr.mxu0 0.0
  %141 = vmatpush1.msra.mxu0 0.0
  %142 = vmatprep.subr.mxu0 0.0
  %143 = vmatpush1.msra.mxu0 0.0
  %144 = vmatprep.subr.mxu0 0.0
  %145 = vmatpush1.msra.mxu0 0.0
  %146 = vmatprep.subr.mxu0 0.0
  %147 = vmatpush1.msra.mxu0 0.0
  %148 = vmatprep.subr.mxu0 0.0
  %149 = vmatpush1.msra.mxu0 0.0
  %150 = vmatprep.subr.mxu0 0.0
  %151 = vmatpush1.msra.mxu0 0.0
  %152 = vmatprep.subr.mxu0 0.0
  %153 = vmatpush1.msra.mxu0 0.0
  %154 = vmatprep.subr.mxu0 0.0
  %155 = vmatpush1.msra.mxu0 0.0
  %156 = vmatprep.subr.mxu0 0.0
  %157 = vmatpush1.msra.mxu0 0.0
  %158 = vmatprep.subr.mxu0 0.0
  %159 = vmatpush1.msra.mxu0 0.0
  %160 = vmatprep.subr.mxu0 0.0
  %161 = vmatpush1.msra.mxu0 0.0
  %162 = vmatprep.subr.mxu0 0.0
  %163 = vmatpush1.msra.mxu0 0.0
  %164 = vmatprep.subr.mxu0 0.0
  %165 = vmatpush1.msra.mxu0 0.0
  %166 = vmatprep.subr.mxu0 0.0
  %167 = vmatpush1.msra.mxu0 0.0
  %168 = vmatprep.mubr.f32.mxu0 0.0
  %169 = vmatmul.mubr.f32.gmra.mrb[0].mxu0 %v72
  %v170 = vpop.f32.mrb[0].mxu0
  %v171 = vadd.f32 0.0, %v170
  %v172 = vpop.f32.mrb[0].mxu0
  %173 = vmatprep.mubr.f32.mxu0 0.0
  %174 = vmatmul.mubr.f32.gmra.mrb[0].mxu0 %v73
  %v175 = vpop.f32.mrb[0].mxu0
  %v176 = vadd.f32 0.0, %v175
  %v177 = vpop.f32.mrb[0].mxu0
  %178 = vmatprep.mubr.f32.mxu0 0.0
  %179 = vmatmul.mubr.f32.gmra.mrb[0].mxu0 %v74
  %v180 = vpop.f32.mrb[0].mxu0
  %v181 = vadd.f32 0.0, %v180
  %v182 = vpop.f32.mrb[0].mxu0
  %183 = vmatprep.mubr.f32.mxu0 0.0
  %184 = vmatmul.mubr.f32.gmra.mrb[0].mxu0 %v75
  %v185 = vpop.f32.mrb[0].mxu0
  %v186 = vadd.f32 0.0, %v185
  %v187 = vpop.f32.mrb[0].mxu0
  %188 = vmatprep.mubr.f32.mxu0 0.0
  %189 = vmatmul.mubr.f32.gmra.mrb[0].mxu0 %v76
  %v190 = vpop.f32.mrb[0].mxu0
  %v191 = vadd.f32 0.0, %v190
  %v192 = vpop.f32.mrb[0].mxu0
  %193 = vmatprep.mubr.f32.mxu0 0.0
  %194 = vmatmul.mubr.f32.gmra.mrb[0].mxu0 %v77
  %v195 = vpop.f32.mrb[0].mxu0
  %v196 = vadd.f32 0.0, %v195
  %v197 = vpop.f32.mrb[0].mxu0
  %198 = vmatprep.mubr.f32.mxu0 0.0
  %199 = vmatmul.mubr.f32.gmra.mrb[0].mxu0 %v78
  %v200 = vpop.f32.mrb[0].mxu0
  %v201 = vadd.f32 0.0, %v200
  %v202 = vpop.f32.mrb[0].mxu0
  %203 = vmatprep.mubr.f32.mxu0 0.0
  %204 = vmatmul.mubr.f32.gmra.mrb[0].mxu0 %v79
  %v205 = vpop.f32.mrb[0].mxu0
  %v206 = vadd.f32 0.0, %v205
  %v207 = vpop.f32.mrb[0].mxu0
  %208 = vmatprep.mubr.f32.mxu0 0.0
  %209 = vmatmul.mubr.f32.gmra.mrb[0].mxu0 %v80
  %v210 = vpop.f32.mrb[0].mxu0
  %v211 = vadd.f32 0.0, %v210
  %v212 = vpop.f32.mrb[0].mxu0
  %213 = vmatprep.mubr.f32.mxu0 0.0
  %214 = vmatmul.mubr.f32.gmra.mrb[0].mxu0 %v81
  %v215 = vpop.f32.mrb[0].mxu0
  %v216 = vadd.f32 0.0, %v215
  %v217 = vpop.f32.mrb[0].mxu0
  %218 = vmatprep.mubr.f32.mxu0 0.0
  %219 = vmatmul.mubr.f32.gmra.mrb[0].mxu0 %v82
  %v220 = vpop.f32.mrb[0].mxu0
  %v221 = vadd.f32 0.0, %v220
  %v222 = vpop.f32.mrb[0].mxu0
  %223 = vmatprep.mubr.f32.mxu0 0.0
  %224 = vmatmul.mubr.f32.gmra.mrb[0].mxu0 %v83
  %v225 = vpop.f32.mrb[0].mxu0
  %v226 = vadd.f32 0.0, %v225
  %v227 = vpop.f32.mrb[0].mxu0
  %228 = vmatprep.mubr.f32.mxu0 0.0
  %229 = vmatmul.mubr.f32.gmra.mrb[0].mxu0 %v84
  %v230 = vpop.f32.mrb[0].mxu0
  %v231 = vadd.f32 0.0, %v230
  %v232 = vpop.f32.mrb[0].mxu0
  %233 = vmatprep.mubr.f32.mxu0 0.0
  %234 = vmatmul.mubr.f32.gmra.mrb[0].mxu0 %v85
  %v235 = vpop.f32.mrb[0].mxu0
  %v236 = vadd.f32 0.0, %v235
  %v237 = vpop.f32.mrb[0].mxu0
  %238 = vmatprep.mubr.f32.mxu0 0.0
  %239 = vmatmul.mubr.f32.gmra.mrb[0].mxu0 %v86
  %v240 = vpop.f32.mrb[0].mxu0
  %v241 = vadd.f32 0.0, %v240
  %v242 = vpop.f32.mrb[0].mxu0
  %243 = vmatprep.mubr.f32.mxu0 0.0
  %244 = vmatmul.mubr.f32.gmra.mrb[0].mxu0 %v87
  %v245 = vpop.f32.mrb[0].mxu0
  %v246 = vadd.f32 0.0, %v245
  %v247 = vpop.f32.mrb[0].mxu0
  %248 = vdwg.mxu0
  %v249 = vadd.f32 %v40, %v171
  %v250 = vadd.f32 %v41, %v176
  %v251 = vadd.f32 %v42, %v181
  %v252 = vadd.f32 %v43, %v186
  %v253 = vadd.f32 %v44, %v191
  %v254 = vadd.f32 %v45, %v196
  %v255 = vadd.f32 %v46, %v201
  %v256 = vadd.f32 %v47, %v206
  %v257 = vadd.f32 %v48, %v211
  %v258 = vadd.f32 %v49, %v216
  %v259 = vadd.f32 %v50, %v221
  %v260 = vadd.f32 %v51, %v226
  %v261 = vadd.f32 %v52, %v231
  %v262 = vadd.f32 %v53, %v236
  %v263 = vadd.f32 %v54, %v241
  %v264 = vadd.f32 %v55, %v246
  %265 = vst [vmem:[#allocation2] sm:$0xff] %v249
  %266 = vst [vmem:[#allocation2 + $0x8] sm:$0xff] %v250
  %267 = vst [vmem:[#allocation2 + $0x10] sm:$0xff] %v251
  %268 = vst [vmem:[#allocation2 + $0x18] sm:$0xff] %v252
  %269 = vst [vmem:[#allocation2 + $0x20] sm:$0xff] %v253
  %270 = vst [vmem:[#allocation2 + $0x28] sm:$0xff] %v254
  %271 = vst [vmem:[#allocation2 + $0x30] sm:$0xff] %v255
  %272 = vst [vmem:[#allocation2 + $0x38] sm:$0xff] %v256
  %273 = vst [vmem:[#allocation2 + $0x40] sm:$0xff] %v257
  %274 = vst [vmem:[#allocation2 + $0x48] sm:$0xff] %v258
  %275 = vst [vmem:[#allocation2 + $0x50] sm:$0xff] %v259
  %276 = vst [vmem:[#allocation2 + $0x58] sm:$0xff] %v260
  %277 = vst [vmem:[#allocation2 + $0x60] sm:$0xff] %v261
  %278 = vst [vmem:[#allocation2 + $0x68] sm:$0xff] %v262
  %279 = vst [vmem:[#allocation2 + $0x70] sm:$0xff] %v263
  %280 = vst [vmem:[#allocation2 + $0x78] sm:$0xff] %v264
  // Predicated region
  $region26: #{gcn_forward.11} parent=0 // pred_check
    %p281 = pneg %p20
  $region27: #{gcn_forward.11} parent=0 // pred_check_branch
    %283 = sbr.rel (%p281) target = $region29
  $region28: #{gcn_forward.11} parent=0 // pred_region
    %v284 = vld [vmem:[#allocation2] sm:$0xff]
    %v285 = vld [vmem:[#allocation2 + $0x8] sm:$0xff]
    %v286 = vld [vmem:[#allocation2 + $0x10] sm:$0xff]
    %v287 = vld [vmem:[#allocation2 + $0x18] sm:$0xff]
    %v288 = vld [vmem:[#allocation2 + $0x20] sm:$0xff]
    %v289 = vld [vmem:[#allocation2 + $0x28] sm:$0xff]
    %v290 = vld [vmem:[#allocation2 + $0x30] sm:$0xff]
    %v291 = vld [vmem:[#allocation2 + $0x38] sm:$0xff]
    %v292 = vld [vmem:[#allocation2 + $0x40] sm:$0xff]
    %v293 = vld [vmem:[#allocation2 + $0x48] sm:$0xff]
    %v294 = vld [vmem:[#allocation2 + $0x50] sm:$0xff]
    %v295 = vld [vmem:[#allocation2 + $0x58] sm:$0xff]
    %v296 = vld [vmem:[#allocation2 + $0x60] sm:$0xff]
    %v297 = vld [vmem:[#allocation2 + $0x68] sm:$0xff]
    %v298 = vld [vmem:[#allocation2 + $0x70] sm:$0xff]
    %v299 = vld [vmem:[#allocation2 + $0x78] sm:$0xff]
    %v300 = vld [vmem:[%s2] sm:$0x1]
    %v302 = vlaneseq
    %v303 = vshrl.u32 %v302, 7
    %v304 = vsub.s32 0, %v303
    %v305 = vrot.slane %v300, %v304
    %v307 = vadd.f32 %v284, %v305
    %v308 = vadd.f32 %v285, %v305
    %v309 = vadd.f32 %v286, %v305
    %v310 = vadd.f32 %v287, %v305
    %v311 = vadd.f32 %v288, %v305
    %v312 = vadd.f32 %v289, %v305
    %v313 = vadd.f32 %v290, %v305
    %v314 = vadd.f32 %v291, %v305
    %v315 = vadd.f32 %v292, %v305
    %v316 = vadd.f32 %v293, %v305
    %v317 = vadd.f32 %v294, %v305
    %v318 = vadd.f32 %v295, %v305
    %v319 = vadd.f32 %v296, %v305
    %v320 = vadd.f32 %v297, %v305
    %v321 = vadd.f32 %v298, %v305
    %v322 = vadd.f32 %v299, %v305
    %v323 = vtanh.pop %v307
    %v324 = vtanh.pop %v308
    %v325 = vtanh.pop %v309
    %v326 = vtanh.pop %v310
    %v327 = vtanh.pop %v311
    %v328 = vtanh.pop %v312
    %v329 = vtanh.pop %v313
    %v330 = vtanh.pop %v314
    %v331 = vtanh.pop %v315
    %v332 = vtanh.pop %v316
    %v333 = vtanh.pop %v317
    %v334 = vtanh.pop %v318
    %v335 = vtanh.pop %v319
    %v336 = vtanh.pop %v320
    %v337 = vtanh.pop %v321
    %v338 = vtanh.pop %v322
    %v339 = vld [vmem:[%s3] sm:$0xff]
    %v340 = vld [vmem:[%s3 + $0x8] sm:$0xff]
    %v341 = vld [vmem:[%s3 + $0x10] sm:$0xff]
    %v342 = vld [vmem:[%s3 + $0x18] sm:$0xff]
    %v343 = vld [vmem:[%s3 + $0x20] sm:$0xff]
    %v344 = vld [vmem:[%s3 + $0x28] sm:$0xff]
    %v345 = vld [vmem:[%s3 + $0x30] sm:$0xff]
    %v346 = vld [vmem:[%s3 + $0x38] sm:$0xff]
    %v347 = vld [vmem:[%s3 + $0x40] sm:$0xff]
    %v348 = vld [vmem:[%s3 + $0x48] sm:$0xff]
    %v349 = vld [vmem:[%s3 + $0x50] sm:$0xff]
    %v350 = vld [vmem:[%s3 + $0x58] sm:$0xff]
    %v351 = vld [vmem:[%s3 + $0x60] sm:$0xff]
    %v352 = vld [vmem:[%s3 + $0x68] sm:$0xff]
    %v353 = vld [vmem:[%s3 + $0x70] sm:$0xff]
    %v354 = vld [vmem:[%s3 + $0x78] sm:$0xff]
    %v355 = vld [vmem:[%s4] sm:$0x1]
    %v357 = vlaneseq
    %v358 = vshrl.u32 %v357, 7
    %v359 = vsub.s32 0, %v358
    %v360 = vrot.slane %v355, %v359
    %362 = vmatprep.subr.mxu0 0.0
    %363 = vmatpush1.msra.mxu0 %v339
    %364 = vmatprep.subr.mxu0 0.0
    %365 = vmatpush1.msra.mxu0 %v340
    %366 = vmatprep.subr.mxu0 0.0
    %367 = vmatpush1.msra.mxu0 %v341
    %368 = vmatprep.subr.mxu0 0.0
    %369 = vmatpush1.msra.mxu0 %v342
    %370 = vmatprep.subr.mxu0 0.0
    %371 = vmatpush1.msra.mxu0 %v343
    %372 = vmatprep.subr.mxu0 0.0
    %373 = vmatpush1.msra.mxu0 %v344
    %374 = vmatprep.subr.mxu0 0.0
    %375 = vmatpush1.msra.mxu0 %v345
    %376 = vmatprep.subr.mxu0 0.0
    %377 = vmatpush1.msra.mxu0 %v346
    %378 = vmatprep.subr.mxu0 0.0
    %379 = vmatpush1.msra.mxu0 %v347
    %380 = vmatprep.subr.mxu0 0.0
    %381 = vmatpush1.msra.mxu0 %v348
    %382 = vmatprep.subr.mxu0 0.0
    %383 = vmatpush1.msra.mxu0 %v349
    %384 = vmatprep.subr.mxu0 0.0
    %385 = vmatpush1.msra.mxu0 %v350
    %386 = vmatprep.subr.mxu0 0.0
    %387 = vmatpush1.msra.mxu0 %v351
    %388 = vmatprep.subr.mxu0 0.0
    %389 = vmatpush1.msra.mxu0 %v352
    %390 = vmatprep.subr.mxu0 0.0
    %391 = vmatpush1.msra.mxu0 %v353
    %392 = vmatprep.subr.mxu0 0.0
    %393 = vmatpush1.msra.mxu0 %v354
    %394 = vmatprep.subr.mxu0 0.0
    %395 = vmatpush1.msra.mxu0 0.0
    %396 = vmatprep.subr.mxu0 0.0
    %397 = vmatpush1.msra.mxu0 0.0
    %398 = vmatprep.subr.mxu0 0.0
    %399 = vmatpush1.msra.mxu0 0.0
    %400 = vmatprep.subr.mxu0 0.0
    %401 = vmatpush1.msra.mxu0 0.0
    %402 = vmatprep.subr.mxu0 0.0
    %403 = vmatpush1.msra.mxu0 0.0
    %404 = vmatprep.subr.mxu0 0.0
    %405 = vmatpush1.msra.mxu0 0.0
    %406 = vmatprep.subr.mxu0 0.0
    %407 = vmatpush1.msra.mxu0 0.0
    %408 = vmatprep.subr.mxu0 0.0
    %409 = vmatpush1.msra.mxu0 0.0
    %410 = vmatprep.subr.mxu0 0.0
    %411 = vmatpush1.msra.mxu0 0.0
    %412 = vmatprep.subr.mxu0 0.0
    %413 = vmatpush1.msra.mxu0 0.0
    %414 = vmatprep.subr.mxu0 0.0
    %415 = vmatpush1.msra.mxu0 0.0
    %416 = vmatprep.subr.mxu0 0.0
    %417 = vmatpush1.msra.mxu0 0.0
    %418 = vmatprep.subr.mxu0 0.0
    %419 = vmatpush1.msra.mxu0 0.0
    %420 = vmatprep.subr.mxu0 0.0
    %421 = vmatpush1.msra.mxu0 0.0
    %422 = vmatprep.subr.mxu0 0.0
    %423 = vmatpush1.msra.mxu0 0.0
    %424 = vmatprep.subr.mxu0 0.0
    %425 = vmatpush1.msra.mxu0 0.0
    %426 = vmatprep.mubr.f32.mxu0 0.0
    %427 = vmatmul.mubr.f32.gmra.mrb[0].mxu0 %v323
    %v428 = vpop.f32.mrb[0].mxu0
    %v429 = vadd.f32 %v360, %v428
    %v430 = vpop.f32.mrb[0].mxu0
    %431 = vmatprep.mubr.f32.mxu0 0.0
    %432 = vmatmul.mubr.f32.gmra.mrb[0].mxu0 %v324
    %v433 = vpop.f32.mrb[0].mxu0
    %v434 = vadd.f32 %v360, %v433
    %v435 = vpop.f32.mrb[0].mxu0
    %436 = vmatprep.mubr.f32.mxu0 0.0
    %437 = vmatmul.mubr.f32.gmra.mrb[0].mxu0 %v325
    %v438 = vpop.f32.mrb[0].mxu0
    %v439 = vadd.f32 %v360, %v438
    %v440 = vpop.f32.mrb[0].mxu0
    %441 = vmatprep.mubr.f32.mxu0 0.0
    %442 = vmatmul.mubr.f32.gmra.mrb[0].mxu0 %v326
    %v443 = vpop.f32.mrb[0].mxu0
    %v444 = vadd.f32 %v360, %v443
    %v445 = vpop.f32.mrb[0].mxu0
    %446 = vmatprep.mubr.f32.mxu0 0.0
    %447 = vmatmul.mubr.f32.gmra.mrb[0].mxu0 %v327
    %v448 = vpop.f32.mrb[0].mxu0
    %v449 = vadd.f32 %v360, %v448
    %v450 = vpop.f32.mrb[0].mxu0
    %451 = vmatprep.mubr.f32.mxu0 0.0
    %452 = vmatmul.mubr.f32.gmra.mrb[0].mxu0 %v328
    %v453 = vpop.f32.mrb[0].mxu0
    %v454 = vadd.f32 %v360, %v453
    %v455 = vpop.f32.mrb[0].mxu0
    %456 = vmatprep.mubr.f32.mxu0 0.0
    %457 = vmatmul.mubr.f32.gmra.mrb[0].mxu0 %v329
    %v458 = vpop.f32.mrb[0].mxu0
    %v459 = vadd.f32 %v360, %v458
    %v460 = vpop.f32.mrb[0].mxu0
    %461 = vmatprep.mubr.f32.mxu0 0.0
    %462 = vmatmul.mubr.f32.gmra.mrb[0].mxu0 %v330
    %v463 = vpop.f32.mrb[0].mxu0
    %v464 = vadd.f32 %v360, %v463
    %v465 = vpop.f32.mrb[0].mxu0
    %466 = vmatprep.mubr.f32.mxu0 0.0
    %467 = vmatmul.mubr.f32.gmra.mrb[0].mxu0 %v331
    %v468 = vpop.f32.mrb[0].mxu0
    %v469 = vadd.f32 %v360, %v468
    %v470 = vpop.f32.mrb[0].mxu0
    %471 = vmatprep.mubr.f32.mxu0 0.0
    %472 = vmatmul.mubr.f32.gmra.mrb[0].mxu0 %v332
    %v473 = vpop.f32.mrb[0].mxu0
    %v474 = vadd.f32 %v360, %v473
    %v475 = vpop.f32.mrb[0].mxu0
    %476 = vmatprep.mubr.f32.mxu0 0.0
    %477 = vmatmul.mubr.f32.gmra.mrb[0].mxu0 %v333
    %v478 = vpop.f32.mrb[0].mxu0
    %v479 = vadd.f32 %v360, %v478
    %v480 = vpop.f32.mrb[0].mxu0
    %481 = vmatprep.mubr.f32.mxu0 0.0
    %482 = vmatmul.mubr.f32.gmra.mrb[0].mxu0 %v334
    %v483 = vpop.f32.mrb[0].mxu0
    %v484 = vadd.f32 %v360, %v483
    %v485 = vpop.f32.mrb[0].mxu0
    %486 = vmatprep.mubr.f32.mxu0 0.0
    %487 = vmatmul.mubr.f32.gmra.mrb[0].mxu0 %v335
    %v488 = vpop.f32.mrb[0].mxu0
    %v489 = vadd.f32 %v360, %v488
    %v490 = vpop.f32.mrb[0].mxu0
    %491 = vmatprep.mubr.f32.mxu0 0.0
    %492 = vmatmul.mubr.f32.gmra.mrb[0].mxu0 %v336
    %v493 = vpop.f32.mrb[0].mxu0
    %v494 = vadd.f32 %v360, %v493
    %v495 = vpop.f32.mrb[0].mxu0
    %496 = vmatprep.mubr.f32.mxu0 0.0
    %497 = vmatmul.mubr.f32.gmra.mrb[0].mxu0 %v337
    %v498 = vpop.f32.mrb[0].mxu0
    %v499 = vadd.f32 %v360, %v498
    %v500 = vpop.f32.mrb[0].mxu0
    %501 = vmatprep.mubr.f32.mxu0 0.0
    %502 = vmatmul.mubr.f32.gmra.mrb[0].mxu0 %v338
    %v503 = vpop.f32.mrb[0].mxu0
    %v504 = vadd.f32 %v360, %v503
    %v505 = vpop.f32.mrb[0].mxu0
    %506 = vdwg.mxu0
    %507 = vst [vmem:[%s5] sm:$0xff] %v429
    %508 = vst [vmem:[%s5 + $0x8] sm:$0xff] %v434
    %509 = vst [vmem:[%s5 + $0x10] sm:$0xff] %v439
    %510 = vst [vmem:[%s5 + $0x18] sm:$0xff] %v444
    %511 = vst [vmem:[%s5 + $0x20] sm:$0xff] %v449
    %512 = vst [vmem:[%s5 + $0x28] sm:$0xff] %v454
    %513 = vst [vmem:[%s5 + $0x30] sm:$0xff] %v459
    %514 = vst [vmem:[%s5 + $0x38] sm:$0xff] %v464
    %515 = vst [vmem:[%s5 + $0x40] sm:$0xff] %v469
    %516 = vst [vmem:[%s5 + $0x48] sm:$0xff] %v474
    %517 = vst [vmem:[%s5 + $0x50] sm:$0xff] %v479
    %518 = vst [vmem:[%s5 + $0x58] sm:$0xff] %v484
    %519 = vst [vmem:[%s5 + $0x60] sm:$0xff] %v489
    %520 = vst [vmem:[%s5 + $0x68] sm:$0xff] %v494
    %521 = vst [vmem:[%s5 + $0x70] sm:$0xff] %v499
    %522 = vst [vmem:[%s5 + $0x78] sm:$0xff] %v504
  $region29: #{gcn_forward.11} parent=0 // pred_fallthru
    _
  // Predicated region
  $region30: #{gcn_forward.11} parent=0 // pred_check
    _
  $region31: #{gcn_forward.11} parent=0 // pred_check_branch
    %524 = sbr.rel (0) target = $region33
  $region32: #{gcn_forward.11} parent=0 // pred_region
    _
  $region33: #{gcn_forward.11} parent=0 // pred_fallthru
    _
  // Predicated region
  $region34: #{gcn_forward.11} parent=0 // pred_check
    _
  $region35: #{gcn_forward.11} parent=0 // pred_check_branch
    %526 = sbr.rel (0) target = $region37
  $region36: #{gcn_forward.11} parent=0 // pred_region
    _
  $region37: #{gcn_forward.11} parent=0 // pred_fallthru
    _

</llo_original>
